<compile_context>
chip_gen: v7x
topology: tpu7x:2x2x1
jax: 0.10.0
libtpu: 0.0.40
codegen_flags: <defaults>
</compile_context>

<pallas_src>
import functools

import jax
import jax.numpy as jnp
from jax.experimental import pallas as pl
from jax.experimental.pallas import tpu as pltpu


VMEM_LIMIT = 48 * 1024 * 1024  # bytes; safe on v7x (64 MiB) and v5e/v6e (128 MiB)


def _pick_tile(dim, cap):
    """Largest multiple of 128 that divides `dim` and is <= cap; else `dim`."""
    t = (min(cap, dim) // 128) * 128
    while t >= 128:
        if dim % t == 0:
            return t
        t -= 128
    return dim


# ----------------------------- Pallas kernels ------------------------------

def _linear_kernel(x_ref, w_ref, b_ref, o_ref, *, activation):
    y = jnp.dot(x_ref[...], w_ref[...],
                preferred_element_type=jnp.float32) + b_ref[...]
    if activation == "relu":
        y = jnp.maximum(y, 0.0)
    elif activation == "gelu":
        # TODO(synk): HF DistilBERT uses erf-GELU; tanh approximation kept to
        # stay on EUP-friendly ops (small numeric drift vs. reference).
        y = 0.5 * y * (1.0 + jnp.tanh(0.7978845608028654 *
                                      (y + 0.044715 * y * y * y)))
    o_ref[...] = y.astype(o_ref.dtype)


def linear(x, w, b, activation=None, out_dtype=jnp.bfloat16):
    """Tiled y = act(x @ w + b).  Full-K panels, bf16 MXU inputs, f32 accum.

    `w` must already be bf16, `b` already shaped (1, N) f32 (done at init so
    no per-call convert traffic)."""
    M, K = x.shape
    N = w.shape[1]
    tm = _pick_tile(M, 1024)
    tn = _pick_tile(N, 1536)
    return pl.pallas_call(
        functools.partial(_linear_kernel, activation=activation),
        out_shape=jax.ShapeDtypeStruct((M, N), out_dtype),
        grid=(M // tm, N // tn),
        in_specs=[pl.BlockSpec((tm, K), lambda i, j: (i, 0)),
                  pl.BlockSpec((K, tn), lambda i, j: (0, j)),
                  pl.BlockSpec((1, tn), lambda i, j: (0, j))],
        out_specs=pl.BlockSpec((tm, tn), lambda i, j: (i, j)),
        compiler_params=pltpu.CompilerParams(
            dimension_semantics=("parallel", "parallel"),
            vmem_limit_bytes=VMEM_LIMIT),
    )(x.astype(jnp.bfloat16), w, b)


def _matmul_add_ln_kernel(x_ref, w_ref, b_ref, r_ref, g_ref, be_ref,
                          o_ref, *, eps):
    y = jnp.dot(x_ref[...], w_ref[...], preferred_element_type=jnp.float32)
    y = y + b_ref[...] + r_ref[...].astype(jnp.float32)
    mu = jnp.mean(y, axis=-1, keepdims=True)
    var = jnp.mean(jnp.square(y - mu), axis=-1, keepdims=True)
    o_ref[...] = ((y - mu) * jax.lax.rsqrt(var + eps) * g_ref[...]
                  + be_ref[...]).astype(o_ref.dtype)


def matmul_add_ln(x, w, b, resid, gamma, beta, eps=1e-12):
    """Fused LayerNorm(x @ w + b + resid).  Full-K weight panel resident in
    VMEM, grid only over M; residual aliased to the output buffer."""
    M, K = x.shape
    H = w.shape[1]
    tm = _pick_tile(M, 1024)
    return pl.pallas_call(
        functools.partial(_matmul_add_ln_kernel, eps=eps),
        out_shape=jax.ShapeDtypeStruct((M, H), resid.dtype),
        grid=(M // tm,),
        in_specs=[pl.BlockSpec((tm, K), lambda i: (i, 0)),
                  pl.BlockSpec((K, H), lambda i: (0, 0)),
                  pl.BlockSpec((1, H), lambda i: (0, 0)),
                  pl.BlockSpec((tm, H), lambda i: (i, 0)),
                  pl.BlockSpec((1, H), lambda i: (0, 0)),
                  pl.BlockSpec((1, H), lambda i: (0, 0))],
        out_specs=pl.BlockSpec((tm, H), lambda i: (i, 0)),
        input_output_aliases={3: 0},
        compiler_params=pltpu.CompilerParams(
            dimension_semantics=("parallel",),
            vmem_limit_bytes=VMEM_LIMIT),
    )(x.astype(jnp.bfloat16), w, b, resid, gamma, beta)


def _ln_kernel(x_ref, g_ref, b_ref, o_ref, *, eps):
    x = x_ref[...].astype(jnp.float32)
    mu = jnp.mean(x, axis=-1, keepdims=True)
    var = jnp.mean(jnp.square(x - mu), axis=-1, keepdims=True)
    o_ref[...] = ((x - mu) * jax.lax.rsqrt(var + eps) * g_ref[...]
                  + b_ref[...]).astype(o_ref.dtype)


def layer_norm(x, gamma, beta, eps=1e-12, out_dtype=jnp.bfloat16):
    M, H = x.shape
    tm = _pick_tile(M, 1024)
    return pl.pallas_call(
        functools.partial(_ln_kernel, eps=eps),
        out_shape=jax.ShapeDtypeStruct((M, H), out_dtype),
        grid=(M // tm,),
        in_specs=[pl.BlockSpec((tm, H), lambda i: (i, 0)),
                  pl.BlockSpec((1, H), lambda i: (0, 0)),
                  pl.BlockSpec((1, H), lambda i: (0, 0))],
        out_specs=pl.BlockSpec((tm, H), lambda i: (i, 0)),
        compiler_params=pltpu.CompilerParams(
            dimension_semantics=("parallel",),
            vmem_limit_bytes=VMEM_LIMIT),
    )(x, gamma, beta)


def _attn_kernel(qkv_ref, m_ref, o_ref, *, scale):
    # TODO(synk): for S >= 1024 switch to an online-softmax (flash) form with
    # a KV grid axis instead of materializing the full (S, S) score matrix.
    q = qkv_ref[0, 0, 0] * scale          # (S, hd) bf16, scale folded into q
    k = qkv_ref[1, 0, 0]                  # (S, hd)
    v = qkv_ref[2, 0, 0]                  # (S, hd)
    m = m_ref[0]                          # (1, S) f32 additive mask bias
    # Contract over head_dim without transposing K.
    s = jax.lax.dot_general(q, k, (((1,), (1,)), ((), ())),
                            preferred_element_type=jnp.float32)   # (S, S) f32
    s = s + m
    s = s - jnp.max(s, axis=-1, keepdims=True)
    e = jnp.exp(s)
    p = e * pl.reciprocal(jnp.sum(e, axis=-1, keepdims=True), approx=True)
    ctx = jnp.dot(p.astype(v.dtype), v,
                  preferred_element_type=jnp.float32)              # (S, hd)
    o_ref[0, 0] = ctx.astype(o_ref.dtype)


def attention(qkv, mask_bias, *, batch, seq, hidden, num_heads):
    """qkv: (B*S, 3H) packed projections; returns context (B*S, H).

    Repacks to head-major (3, B, nh, S, hd) so the (B, nh) grid DMAs one
    per-head (S, hd) tile per step and every store is lane-dense."""
    hd = hidden // num_heads
    qkv5 = qkv.reshape(batch, seq, 3, num_heads, hd).transpose(2, 0, 3, 1, 4)
    ctx = pl.pallas_call(
        functools.partial(_attn_kernel, scale=1.0 / (hd ** 0.5)),
        out_shape=jax.ShapeDtypeStruct((batch, num_heads, seq, hd),
                                       jnp.bfloat16),
        grid=(batch, num_heads),
        in_specs=[pl.BlockSpec((3, 1, 1, seq, hd),
                               lambda b, h: (0, b, h, 0, 0)),
                  pl.BlockSpec((1, 1, seq), lambda b, h: (b, 0, 0))],
        out_specs=pl.BlockSpec((1, 1, seq, hd), lambda b, h: (b, h, 0, 0)),
        compiler_params=pltpu.CompilerParams(
            dimension_semantics=("parallel", "parallel"),
            vmem_limit_bytes=VMEM_LIMIT),
    )(qkv5, mask_bias)
    return ctx.transpose(0, 2, 1, 3).reshape(batch * seq, hidden)


def _cls_head_kernel(x_ref, pw_ref, pb_ref, cw_ref, cb_ref, oh_ref,
                     logits_ref, probs_ref, loss_ref):
    h = jnp.dot(x_ref[...], pw_ref[...], preferred_element_type=jnp.float32)
    h = jnp.maximum(h + pb_ref[...], 0.0)                      # pre_classifier
    z = jnp.dot(h, cw_ref[...],
                preferred_element_type=jnp.float32) + cb_ref[...]  # classifier
    logits_ref[...] = z
    m = jnp.max(z, axis=-1, keepdims=True)
    e = jnp.exp(z - m)
    se = jnp.sum(e, axis=-1, keepdims=True)
    probs_ref[...] = e / se
    logp = (z - m) - jnp.log(se)
    loss_ref[...] = -jnp.sum(oh_ref[...] * logp,
                             axis=(0, 1), keepdims=True) / z.shape[0]


def cls_head(pooled, pre_w, pre_b, cls_w, cls_b, onehot):
    """Fused pre_classifier + ReLU + classifier + softmax + mean CE loss."""
    B = pooled.shape[0]
    C = cls_w.shape[1]
    return pl.pallas_call(
        _cls_head_kernel,
        out_shape=(jax.ShapeDtypeStruct((B, C), jnp.float32),
                   jax.ShapeDtypeStruct((B, C), jnp.float32),
                   jax.ShapeDtypeStruct((1, 1), jnp.float32)),
    )(pooled, pre_w, pre_b, cls_w, cls_b, onehot)


# ------------------------------ Model glue ---------------------------------

def init_params(key, *, vocab, max_pos, H, ffn, n_layers, n_labels):
    """Parameters stored in their compute dtypes once (no per-call casts):
    matmul weights bf16, biases / LN params f32 pre-shaped (1, N)."""
    keys = jax.random.split(key, 4 + n_layers)

    def nrm(k, shape, dtype=jnp.bfloat16):
        return (jax.random.normal(k, shape, jnp.float32) * 0.02).astype(dtype)

    params = {
        "word_emb": nrm(keys[0], (vocab, H)),
        "pos_emb": nrm(keys[1], (max_pos, H)),
        "emb_ln_g": jnp.ones((1, H), jnp.float32),
        "emb_ln_b": jnp.zeros((1, H), jnp.float32),
        "pre_w": nrm(keys[2], (H, H), jnp.float32),
        "pre_b": jnp.zeros((1, H), jnp.float32),
        "cls_w": nrm(keys[3], (H, n_labels), jnp.float32),
        "cls_b": jnp.zeros((1, n_labels), jnp.float32),
        "layers": [],
    }
    for li in range(n_layers):
        lk = jax.random.split(keys[4 + li], 6)
        # Q, K, V projections fused into one (H, 3H) weight; column layout is
        # [Q heads | K heads | V heads] which the attention repack expects.
        qkv_w = jnp.concatenate(
            [nrm(lk[0], (H, H)), nrm(lk[1], (H, H)), nrm(lk[2], (H, H))],
            axis=1)
        params["layers"].append({
            "qkv_w": qkv_w, "qkv_b": jnp.zeros((1, 3 * H), jnp.float32),
            "o_w": nrm(lk[3], (H, H)), "o_b": jnp.zeros((1, H), jnp.float32),
            "ln1_g": jnp.ones((1, H), jnp.float32),
            "ln1_b": jnp.zeros((1, H), jnp.float32),
            "ff1_w": nrm(lk[4], (H, ffn)),
            "ff1_b": jnp.zeros((1, ffn), jnp.float32),
            "ff2_w": nrm(lk[5], (ffn, H)),
            "ff2_b": jnp.zeros((1, H), jnp.float32),
            "ln2_g": jnp.ones((1, H), jnp.float32),
            "ln2_b": jnp.zeros((1, H), jnp.float32),
        })
    return params


def distilbert_forward(params, batch_seqs, batch_seq_masks, batch_seq_segments,
                       labels, *, num_heads):
    # batch_seq_segments is accepted for interface parity but (like DistilBERT)
    # unused: DistilBERT has no token-type embeddings.
    del batch_seq_segments
    B, S = batch_seqs.shape
    H = params["word_emb"].shape[1]

    # Embeddings (gather is glue; LayerNorm runs tiled in Pallas, bf16 out).
    x = params["word_emb"][batch_seqs] + params["pos_emb"][:S][None, :, :]
    x = x.reshape(B * S, H)
    x = layer_norm(x, params["emb_ln_g"], params["emb_ln_b"])

    # Additive attention mask bias (f32): 0 where attended, -1e9 where masked.
    mask_bias = (1.0 - batch_seq_masks.astype(jnp.float32)) * -1e9
    mask_bias = mask_bias.reshape(B, 1, S)

    for layer in params["layers"]:
        qkv = linear(x, layer["qkv_w"], layer["qkv_b"])           # (B*S, 3H)
        ctx = attention(qkv, mask_bias, batch=B, seq=S, hidden=H,
                        num_heads=num_heads)                      # (B*S, H)
        x = matmul_add_ln(ctx, layer["o_w"], layer["o_b"], x,
                          layer["ln1_g"], layer["ln1_b"])
        h = linear(x, layer["ff1_w"], layer["ff1_b"], activation="gelu")
        x = matmul_add_ln(h, layer["ff2_w"], layer["ff2_b"], x,
                          layer["ln2_g"], layer["ln2_b"])

    hidden = x.reshape(B, S, H)
    pooled = hidden[:, 0, :].astype(jnp.float32)                  # CLS token
    onehot = jax.nn.one_hot(labels, params["cls_w"].shape[1], dtype=jnp.float32)
    logits, probabilities, loss = cls_head(pooled, params["pre_w"],
                                           params["pre_b"], params["cls_w"],
                                           params["cls_b"], onehot)
    return loss[0, 0], logits, probabilities


# --------------------------------- Main -------------------------------------

if __name__ == "__main__":
    B, S = 2, 8
    H, NUM_HEADS, FFN = 32, 4, 64
    N_LAYERS, VOCAB, MAX_POS, N_LABELS = 2, 100, 16, 2

    key = jax.random.PRNGKey(0)
    k_param, k_ids = jax.random.split(key)

    params = init_params(k_param, vocab=VOCAB, max_pos=MAX_POS, H=H,
                         ffn=FFN, n_layers=N_LAYERS, n_labels=N_LABELS)

    batch_seqs = jax.random.randint(k_ids, (B, S), 0, VOCAB, dtype=jnp.int32)
    batch_seq_masks = jnp.array([[1, 1, 1, 1, 1, 1, 1, 1],
                                 [1, 1, 1, 1, 1, 1, 0, 0]], dtype=jnp.int32)
    batch_seq_segments = jnp.zeros((B, S), dtype=jnp.int32)  # unused (DistilBERT)
    labels = jnp.array([0, 1], dtype=jnp.int32)

    fwd = jax.jit(functools.partial(distilbert_forward, num_heads=NUM_HEADS))
    loss, logits, probabilities = fwd(params, batch_seqs, batch_seq_masks,
                                      batch_seq_segments, labels)
    jax.block_until_ready((loss, logits, probabilities))

    assert logits.shape == (B, N_LABELS)
    assert probabilities.shape == (B, N_LABELS)
    assert loss.shape == ()
    print("KERNEL_OK")
</pallas_src>

<mosaic_0001>
module attributes {stable_mosaic.version = 11 : i64} {
  func.func @_ln_kernel(%arg0: i32, %arg1: memref<16x32xbf16, #tpu.memory_space<vmem>>, %arg2: memref<1x32xf32, #tpu.memory_space<vmem>>, %arg3: memref<1x32xf32, #tpu.memory_space<vmem>>, %arg4: memref<16x32xbf16, #tpu.memory_space<vmem>>) attributes {dimension_semantics = [#tpu.dimension_semantics<parallel>], iteration_bounds = array<i64: 1>, scalar_prefetch = 0 : i64, scratch_operands = 0 : i64, tpu.core_type = #tpu.core_type<tc>, window_params = [{transform_indices = @transform_0, window_bounds = array<i64: 16, 32>}, {pipeline_mode = #tpu.pipeline_mode<synchronous>, transform_indices = @transform_1, window_bounds = array<i64: 1, 32>}, {pipeline_mode = #tpu.pipeline_mode<synchronous>, transform_indices = @transform_2, window_bounds = array<i64: 1, 32>}, {transform_indices = @transform_3, window_bounds = array<i64: 16, 32>}]} {
    %c0 = arith.constant 0 : index
    %c0_0 = arith.constant 0 : index
    %0 = vector.load %arg1[%c0, %c0_0] : memref<16x32xbf16, #tpu.memory_space<vmem>>, vector<16x32xbf16>
    %1 = arith.extf %0 : vector<16x32xbf16> to vector<16x32xf32>
    %cst = arith.constant dense<0.000000e+00> : vector<16xf32>
    %2 = vector.multi_reduction <add>, %1, %cst [1] : vector<16x32xf32> to vector<16xf32>
    %3 = vector.shape_cast %2 : vector<16xf32> to vector<16x1xf32>
    %cst_1 = arith.constant 3.200000e+01 : f32
    %4 = vector.broadcast %cst_1 : f32 to vector<16x1xf32>
    %5 = arith.divf %3, %4 : vector<16x1xf32>
    %6 = vector.broadcast %5 : vector<16x1xf32> to vector<16x32xf32>
    %7 = arith.subf %1, %6 : vector<16x32xf32>
    %8 = arith.mulf %7, %7 : vector<16x32xf32>
    %cst_2 = arith.constant dense<0.000000e+00> : vector<16xf32>
    %9 = vector.multi_reduction <add>, %8, %cst_2 [1] : vector<16x32xf32> to vector<16xf32>
    %10 = vector.shape_cast %9 : vector<16xf32> to vector<16x1xf32>
    %cst_3 = arith.constant 3.200000e+01 : f32
    %11 = vector.broadcast %cst_3 : f32 to vector<16x1xf32>
    %12 = arith.divf %10, %11 : vector<16x1xf32>
    %13 = vector.broadcast %5 : vector<16x1xf32> to vector<16x32xf32>
    %14 = arith.subf %1, %13 : vector<16x32xf32>
    %cst_4 = arith.constant 9.99999996E-13 : f32
    %15 = vector.broadcast %cst_4 : f32 to vector<16x1xf32>
    %16 = arith.addf %12, %15 : vector<16x1xf32>
    %17 = math.rsqrt %16 : vector<16x1xf32>
    %18 = vector.broadcast %17 : vector<16x1xf32> to vector<16x32xf32>
    %19 = arith.mulf %14, %18 : vector<16x32xf32>
    %c0_5 = arith.constant 0 : index
    %c0_6 = arith.constant 0 : index
    %20 = vector.load %arg2[%c0_5, %c0_6] : memref<1x32xf32, #tpu.memory_space<vmem>>, vector<1x32xf32>
    %21 = vector.broadcast %20 : vector<1x32xf32> to vector<16x32xf32>
    %22 = arith.mulf %19, %21 : vector<16x32xf32>
    %c0_7 = arith.constant 0 : index
    %c0_8 = arith.constant 0 : index
    %23 = vector.load %arg3[%c0_7, %c0_8] : memref<1x32xf32, #tpu.memory_space<vmem>>, vector<1x32xf32>
    %24 = vector.broadcast %23 : vector<1x32xf32> to vector<16x32xf32>
    %25 = arith.addf %22, %24 : vector<16x32xf32>
    %26 = arith.truncf %25 : vector<16x32xf32> to vector<16x32xbf16>
    %c0_9 = arith.constant 0 : index
    %c0_10 = arith.constant 0 : index
    %27 = vector.load %arg4[%c0_9, %c0_10] : memref<16x32xbf16, #tpu.memory_space<vmem>>, vector<16x32xbf16>
    tpu.vector_store %arg4[%c0_9, %c0_10], %26 {strides = array<i32>} : memref<16x32xbf16, #tpu.memory_space<vmem>>, vector<16x32xbf16>,
    return
  }
  func.func @transform_0(%arg0: i32) -> (i32, i32) {
    %c0_i32 = arith.constant 0 : i32
    %c0_i32_0 = arith.constant 0 : i32
    return %arg0, %c0_i32 : i32, i32
  }
  func.func @transform_1(%arg0: i32) -> (i32, i32) {
    %c0_i32 = arith.constant 0 : i32
    %c0_i32_0 = arith.constant 0 : i32
    %c0_i32_1 = arith.constant 0 : i32
    return %c0_i32, %c0_i32_0 : i32, i32
  }
  func.func @transform_2(%arg0: i32) -> (i32, i32) {
    %c0_i32 = arith.constant 0 : i32
    %c0_i32_0 = arith.constant 0 : i32
    %c0_i32_1 = arith.constant 0 : i32
    return %c0_i32, %c0_i32_0 : i32, i32
  }
  func.func @transform_3(%arg0: i32) -> (i32, i32) {
    %c0_i32 = arith.constant 0 : i32
    %c0_i32_0 = arith.constant 0 : i32
    return %arg0, %c0_i32 : i32, i32
  }
}

module attributes {stable_mosaic.version = 11 : i64} {
  func.func @_linear_kernel(%arg0: i32, %arg1: i32, %arg2: memref<16x32xbf16, #tpu.memory_space<vmem>>, %arg3: memref<32x96xbf16, #tpu.memory_space<vmem>>, %arg4: memref<1x96xf32, #tpu.memory_space<vmem>>, %arg5: memref<16x96xbf16, #tpu.memory_space<vmem>>) attributes {dimension_semantics = [#tpu.dimension_semantics<parallel>, #tpu.dimension_semantics<parallel>], iteration_bounds = array<i64: 1, 1>, scalar_prefetch = 0 : i64, scratch_operands = 0 : i64, tpu.core_type = #tpu.core_type<tc>, window_params = [{transform_indices = @transform_0, window_bounds = array<i64: 16, 32>}, {transform_indices = @transform_1, window_bounds = array<i64: 32, 96>}, {transform_indices = @transform_2, window_bounds = array<i64: 1, 96>}, {transform_indices = @transform_3, window_bounds = array<i64: 16, 96>}]} {
    %c0 = arith.constant 0 : index
    %c0_0 = arith.constant 0 : index
    %0 = vector.load %arg2[%c0, %c0_0] : memref<16x32xbf16, #tpu.memory_space<vmem>>, vector<16x32xbf16>
    %c0_1 = arith.constant 0 : index
    %c0_2 = arith.constant 0 : index
    %1 = vector.load %arg3[%c0_1, %c0_2] : memref<32x96xbf16, #tpu.memory_space<vmem>>, vector<32x96xbf16>
    %cst = arith.constant dense<0.000000e+00> : vector<16x96xf32>
    %2 = tpu.matmul %0, %1, %cst {dimension_numbers = #tpu.dot_dimension_numbers<[1], [0], [0], [1], [0, 0, 1, 1], [], []>} : vector<16x32xbf16>, vector<32x96xbf16>, vector<16x96xf32> -> vector<16x96xf32>
    %c0_3 = arith.constant 0 : index
    %c0_4 = arith.constant 0 : index
    %3 = vector.load %arg4[%c0_3, %c0_4] : memref<1x96xf32, #tpu.memory_space<vmem>>, vector<1x96xf32>
    %4 = vector.broadcast %3 : vector<1x96xf32> to vector<16x96xf32>
    %5 = arith.addf %2, %4 : vector<16x96xf32>
    %6 = arith.truncf %5 : vector<16x96xf32> to vector<16x96xbf16>
    %c0_5 = arith.constant 0 : index
    %c0_6 = arith.constant 0 : index
    %7 = vector.load %arg5[%c0_5, %c0_6] : memref<16x96xbf16, #tpu.memory_space<vmem>>, vector<16x96xbf16>
    tpu.vector_store %arg5[%c0_5, %c0_6], %6 {strides = array<i32>} : memref<16x96xbf16, #tpu.memory_space<vmem>>, vector<16x96xbf16>,
    return
  }
  func.func @transform_0(%arg0: i32, %arg1: i32) -> (i32, i32) {
    %c0_i32 = arith.constant 0 : i32
    %c0_i32_0 = arith.constant 0 : i32
    return %arg0, %c0_i32 : i32, i32
  }
  func.func @transform_1(%arg0: i32, %arg1: i32) -> (i32, i32) {
    %c0_i32 = arith.constant 0 : i32
    %c0_i32_0 = arith.constant 0 : i32
    return %c0_i32, %arg1 : i32, i32
  }
  func.func @transform_2(%arg0: i32, %arg1: i32) -> (i32, i32) {
    %c0_i32 = arith.constant 0 : i32
    %c0_i32_0 = arith.constant 0 : i32
    return %c0_i32, %arg1 : i32, i32
  }
  func.func @transform_3(%arg0: i32, %arg1: i32) -> (i32, i32) {
    %c0_i32 = arith.constant 0 : i32
    return %arg0, %arg1 : i32, i32
  }
}

module attributes {stable_mosaic.version = 11 : i64} {
  func.func @_attn_kernel(%arg0: i32, %arg1: i32, %arg2: memref<3x1x1x8x8xbf16, #tpu.memory_space<vmem>>, %arg3: memref<1x1x8xf32, #tpu.memory_space<vmem>>, %arg4: memref<1x1x8x8xbf16, #tpu.memory_space<vmem>>) attributes {dimension_semantics = [#tpu.dimension_semantics<parallel>, #tpu.dimension_semantics<parallel>], iteration_bounds = array<i64: 2, 4>, scalar_prefetch = 0 : i64, scratch_operands = 0 : i64, tpu.core_type = #tpu.core_type<tc>, window_params = [{transform_indices = @transform_0, window_bounds = array<i64: 3, 1, 1, 8, 8>}, {transform_indices = @transform_1, window_bounds = array<i64: 1, 1, 8>}, {transform_indices = @transform_2, window_bounds = array<i64: 1, 1, 8, 8>}]} {
    %c0 = arith.constant 0 : index
    %c0_0 = arith.constant 0 : index
    %c0_1 = arith.constant 0 : index
    %c0_2 = arith.constant 0 : index
    %c0_3 = arith.constant 0 : index
    %0 = vector.load %arg2[%c0, %c0_0, %c0_1, %c0_2, %c0_3] : memref<3x1x1x8x8xbf16, #tpu.memory_space<vmem>>, vector<1x1x1x8x8xbf16>
    %1 = vector.shape_cast %0 : vector<1x1x1x8x8xbf16> to vector<8x8xbf16>
    %cst = arith.constant 3.535160e-01 : bf16
    %2 = vector.broadcast %cst : bf16 to vector<8x8xbf16>
    %3 = arith.mulf %1, %2 : vector<8x8xbf16>
    %c1 = arith.constant 1 : index
    %c0_4 = arith.constant 0 : index
    %c0_5 = arith.constant 0 : index
    %c0_6 = arith.constant 0 : index
    %c0_7 = arith.constant 0 : index
    %4 = vector.load %arg2[%c1, %c0_4, %c0_5, %c0_6, %c0_7] : memref<3x1x1x8x8xbf16, #tpu.memory_space<vmem>>, vector<1x1x1x8x8xbf16>
    %5 = vector.shape_cast %4 : vector<1x1x1x8x8xbf16> to vector<8x8xbf16>
    %c2 = arith.constant 2 : index
    %c0_8 = arith.constant 0 : index
    %c0_9 = arith.constant 0 : index
    %c0_10 = arith.constant 0 : index
    %c0_11 = arith.constant 0 : index
    %6 = vector.load %arg2[%c2, %c0_8, %c0_9, %c0_10, %c0_11] : memref<3x1x1x8x8xbf16, #tpu.memory_space<vmem>>, vector<1x1x1x8x8xbf16>
    %7 = vector.shape_cast %6 : vector<1x1x1x8x8xbf16> to vector<8x8xbf16>
    %c0_12 = arith.constant 0 : index
    %c0_13 = arith.constant 0 : index
    %c0_14 = arith.constant 0 : index
    %8 = vector.load %arg3[%c0_12, %c0_13, %c0_14] : memref<1x1x8xf32, #tpu.memory_space<vmem>>, vector<1x1x8xf32>
    %9 = vector.shape_cast %8 : vector<1x1x8xf32> to vector<1x8xf32>
    %cst_15 = arith.constant dense<0.000000e+00> : vector<8x8xf32>
    %10 = tpu.matmul %3, %5, %cst_15 {dimension_numbers = #tpu.dot_dimension_numbers<[1], [1], [0], [0], [0, 0, 1, 0], [], []>} : vector<8x8xbf16>, vector<8x8xbf16>, vector<8x8xf32> -> vector<8x8xf32>
    %11 = vector.broadcast %9 : vector<1x8xf32> to vector<8x8xf32>
    %12 = arith.addf %10, %11 : vector<8x8xf32>
    %cst_16 = arith.constant dense<0xFF800000> : vector<8xf32>
    %13 = vector.multi_reduction <maximumf>, %12, %cst_16 [1] : vector<8x8xf32> to vector<8xf32>
    %14 = vector.shape_cast %13 : vector<8xf32> to vector<8x1xf32>
    %15 = vector.broadcast %14 : vector<8x1xf32> to vector<8x8xf32>
    %16 = arith.subf %12, %15 : vector<8x8xf32>
    %17 = math.exp %16 : vector<8x8xf32>
    %cst_17 = arith.constant dense<0.000000e+00> : vector<8xf32>
    %18 = vector.multi_reduction <add>, %17, %cst_17 [1] : vector<8x8xf32> to vector<8xf32>
    %19 = vector.shape_cast %18 : vector<8xf32> to vector<8x1xf32>
    %20 = tpu.reciprocal %19 {approx = true} : vector<8x1xf32> -> vector<8x1xf32>
    %21 = vector.broadcast %20 : vector<8x1xf32> to vector<8x8xf32>
    %22 = arith.mulf %17, %21 : vector<8x8xf32>
    %23 = arith.truncf %22 : vector<8x8xf32> to vector<8x8xbf16>
    %cst_18 = arith.constant dense<0.000000e+00> : vector<8x8xf32>
    %24 = tpu.matmul %23, %7, %cst_18 {dimension_numbers = #tpu.dot_dimension_numbers<[1], [0], [0], [1], [0, 0, 1, 1], [], []>} : vector<8x8xbf16>, vector<8x8xbf16>, vector<8x8xf32> -> vector<8x8xf32>
    %25 = arith.truncf %24 : vector<8x8xf32> to vector<8x8xbf16>
    %c0_19 = arith.constant 0 : index
    %c0_20 = arith.constant 0 : index
    %c0_21 = arith.constant 0 : index
    %c0_22 = arith.constant 0 : index
    %26 = vector.load %arg4[%c0_19, %c0_20, %c0_21, %c0_22] : memref<1x1x8x8xbf16, #tpu.memory_space<vmem>>, vector<1x1x8x8xbf16>
    %27 = vector.shape_cast %26 : vector<1x1x8x8xbf16> to vector<8x8xbf16>
    %28 = vector.shape_cast %25 : vector<8x8xbf16> to vector<1x1x8x8xbf16>
    tpu.vector_store %arg4[%c0_19, %c0_20, %c0_21, %c0_22], %28 {strides = array<i32>} : memref<1x1x8x8xbf16, #tpu.memory_space<vmem>>, vector<1x1x8x8xbf16>,
    return
  }
  func.func @transform_0(%arg0: i32, %arg1: i32) -> (i32, i32, i32, i32, i32) {
    %c0_i32 = arith.constant 0 : i32
    %c0_i32_0 = arith.constant 0 : i32
    %c0_i32_1 = arith.constant 0 : i32
    %c0_i32_2 = arith.constant 0 : i32
    return %c0_i32, %arg0, %arg1, %c0_i32_0, %c0_i32_1 : i32, i32, i32, i32, i32
  }
  func.func @transform_1(%arg0: i32, %arg1: i32) -> (i32, i32, i32) {
    %c0_i32 = arith.constant 0 : i32
    %c0_i32_0 = arith.constant 0 : i32
    %c0_i32_1 = arith.constant 0 : i32
    return %arg0, %c0_i32, %c0_i32_0 : i32, i32, i32
  }
  func.func @transform_2(%arg0: i32, %arg1: i32) -> (i32, i32, i32, i32) {
    %c0_i32 = arith.constant 0 : i32
    %c0_i32_0 = arith.constant 0 : i32
    %c0_i32_1 = arith.constant 0 : i32
    return %arg0, %arg1, %c0_i32, %c0_i32_0 : i32, i32, i32, i32
  }
}

module attributes {stable_mosaic.version = 11 : i64} {
  func.func @_matmul_add_ln_kernel(%arg0: i32, %arg1: memref<16x32xbf16, #tpu.memory_space<vmem>>, %arg2: memref<32x32xbf16, #tpu.memory_space<vmem>>, %arg3: memref<1x32xf32, #tpu.memory_space<vmem>>, %arg4: memref<16x32xbf16, #tpu.memory_space<vmem>>, %arg5: memref<1x32xf32, #tpu.memory_space<vmem>>, %arg6: memref<1x32xf32, #tpu.memory_space<vmem>>, %arg7: memref<16x32xbf16, #tpu.memory_space<vmem>>) attributes {dimension_semantics = [#tpu.dimension_semantics<parallel>], iteration_bounds = array<i64: 1>, scalar_prefetch = 0 : i64, scratch_operands = 0 : i64, tpu.core_type = #tpu.core_type<tc>, window_params = [{transform_indices = @transform_0, window_bounds = array<i64: 16, 32>}, {pipeline_mode = #tpu.pipeline_mode<synchronous>, transform_indices = @transform_1, window_bounds = array<i64: 32, 32>}, {pipeline_mode = #tpu.pipeline_mode<synchronous>, transform_indices = @transform_2, window_bounds = array<i64: 1, 32>}, {transform_indices = @transform_3, window_bounds = array<i64: 16, 32>}, {pipeline_mode = #tpu.pipeline_mode<synchronous>, transform_indices = @transform_4, window_bounds = array<i64: 1, 32>}, {pipeline_mode = #tpu.pipeline_mode<synchronous>, transform_indices = @transform_5, window_bounds = array<i64: 1, 32>}, {transform_indices = @transform_6, window_bounds = array<i64: 16, 32>}]} {
    %c0 = arith.constant 0 : index
    %c0_0 = arith.constant 0 : index
    %0 = vector.load %arg1[%c0, %c0_0] : memref<16x32xbf16, #tpu.memory_space<vmem>>, vector<16x32xbf16>
    %c0_1 = arith.constant 0 : index
    %c0_2 = arith.constant 0 : index
    %1 = vector.load %arg2[%c0_1, %c0_2] : memref<32x32xbf16, #tpu.memory_space<vmem>>, vector<32x32xbf16>
    %cst = arith.constant dense<0.000000e+00> : vector<16x32xf32>
    %2 = tpu.matmul %0, %1, %cst {dimension_numbers = #tpu.dot_dimension_numbers<[1], [0], [0], [1], [0, 0, 1, 1], [], []>} : vector<16x32xbf16>, vector<32x32xbf16>, vector<16x32xf32> -> vector<16x32xf32>
    %c0_3 = arith.constant 0 : index
    %c0_4 = arith.constant 0 : index
    %3 = vector.load %arg3[%c0_3, %c0_4] : memref<1x32xf32, #tpu.memory_space<vmem>>, vector<1x32xf32>
    %4 = vector.broadcast %3 : vector<1x32xf32> to vector<16x32xf32>
    %5 = arith.addf %2, %4 : vector<16x32xf32>
    %c0_5 = arith.constant 0 : index
    %c0_6 = arith.constant 0 : index
    %6 = vector.load %arg4[%c0_5, %c0_6] : memref<16x32xbf16, #tpu.memory_space<vmem>>, vector<16x32xbf16>
    %7 = arith.extf %6 : vector<16x32xbf16> to vector<16x32xf32>
    %8 = arith.addf %5, %7 : vector<16x32xf32>
    %cst_7 = arith.constant dense<0.000000e+00> : vector<16xf32>
    %9 = vector.multi_reduction <add>, %8, %cst_7 [1] : vector<16x32xf32> to vector<16xf32>
    %10 = vector.shape_cast %9 : vector<16xf32> to vector<16x1xf32>
    %cst_8 = arith.constant 3.200000e+01 : f32
    %11 = vector.broadcast %cst_8 : f32 to vector<16x1xf32>
    %12 = arith.divf %10, %11 : vector<16x1xf32>
    %13 = vector.broadcast %12 : vector<16x1xf32> to vector<16x32xf32>
    %14 = arith.subf %8, %13 : vector<16x32xf32>
    %15 = arith.mulf %14, %14 : vector<16x32xf32>
    %cst_9 = arith.constant dense<0.000000e+00> : vector<16xf32>
    %16 = vector.multi_reduction <add>, %15, %cst_9 [1] : vector<16x32xf32> to vector<16xf32>
    %17 = vector.shape_cast %16 : vector<16xf32> to vector<16x1xf32>
    %cst_10 = arith.constant 3.200000e+01 : f32
    %18 = vector.broadcast %cst_10 : f32 to vector<16x1xf32>
    %19 = arith.divf %17, %18 : vector<16x1xf32>
    %20 = vector.broadcast %12 : vector<16x1xf32> to vector<16x32xf32>
    %21 = arith.subf %8, %20 : vector<16x32xf32>
    %cst_11 = arith.constant 9.99999996E-13 : f32
    %22 = vector.broadcast %cst_11 : f32 to vector<16x1xf32>
    %23 = arith.addf %19, %22 : vector<16x1xf32>
    %24 = math.rsqrt %23 : vector<16x1xf32>
    %25 = vector.broadcast %24 : vector<16x1xf32> to vector<16x32xf32>
    %26 = arith.mulf %21, %25 : vector<16x32xf32>
    %c0_12 = arith.constant 0 : index
    %c0_13 = arith.constant 0 : index
    %27 = vector.load %arg5[%c0_12, %c0_13] : memref<1x32xf32, #tpu.memory_space<vmem>>, vector<1x32xf32>
    %28 = vector.broadcast %27 : vector<1x32xf32> to vector<16x32xf32>
    %29 = arith.mulf %26, %28 : vector<16x32xf32>
    %c0_14 = arith.constant 0 : index
    %c0_15 = arith.constant 0 : index
    %30 = vector.load %arg6[%c0_14, %c0_15] : memref<1x32xf32, #tpu.memory_space<vmem>>, vector<1x32xf32>
    %31 = vector.broadcast %30 : vector<1x32xf32> to vector<16x32xf32>
    %32 = arith.addf %29, %31 : vector<16x32xf32>
    %33 = arith.truncf %32 : vector<16x32xf32> to vector<16x32xbf16>
    %c0_16 = arith.constant 0 : index
    %c0_17 = arith.constant 0 : index
    %34 = vector.load %arg7[%c0_16, %c0_17] : memref<16x32xbf16, #tpu.memory_space<vmem>>, vector<16x32xbf16>
    tpu.vector_store %arg7[%c0_16, %c0_17], %33 {strides = array<i32>} : memref<16x32xbf16, #tpu.memory_space<vmem>>, vector<16x32xbf16>,
    return
  }
  func.func @transform_0(%arg0: i32) -> (i32, i32) {
    %c0_i32 = arith.constant 0 : i32
    %c0_i32_0 = arith.constant 0 : i32
    return %arg0, %c0_i32 : i32, i32
  }
  func.func @transform_1(%arg0: i32) -> (i32, i32) {
    %c0_i32 = arith.constant 0 : i32
    %c0_i32_0 = arith.constant 0 : i32
    %c0_i32_1 = arith.constant 0 : i32
    return %c0_i32, %c0_i32_0 : i32, i32
  }
  func.func @transform_2(%arg0: i32) -> (i32, i32) {
    %c0_i32 = arith.constant 0 : i32
    %c0_i32_0 = arith.constant 0 : i32
    %c0_i32_1 = arith.constant 0 : i32
    return %c0_i32, %c0_i32_0 : i32, i32
  }
  func.func @transform_3(%arg0: i32) -> (i32, i32) {
    %c0_i32 = arith.constant 0 : i32
    %c0_i32_0 = arith.constant 0 : i32
    return %arg0, %c0_i32 : i32, i32
  }
  func.func @transform_4(%arg0: i32) -> (i32, i32) {
    %c0_i32 = arith.constant 0 : i32
    %c0_i32_0 = arith.constant 0 : i32
    %c0_i32_1 = arith.constant 0 : i32
    return %c0_i32, %c0_i32_0 : i32, i32
  }
  func.func @transform_5(%arg0: i32) -> (i32, i32) {
    %c0_i32 = arith.constant 0 : i32
    %c0_i32_0 = arith.constant 0 : i32
    %c0_i32_1 = arith.constant 0 : i32
    return %c0_i32, %c0_i32_0 : i32, i32
  }
  func.func @transform_6(%arg0: i32) -> (i32, i32) {
    %c0_i32 = arith.constant 0 : i32
    %c0_i32_0 = arith.constant 0 : i32
    return %arg0, %c0_i32 : i32, i32
  }
}

module attributes {stable_mosaic.version = 11 : i64} {
  func.func @_linear_kernel(%arg0: i32, %arg1: i32, %arg2: memref<16x32xbf16, #tpu.memory_space<vmem>>, %arg3: memref<32x64xbf16, #tpu.memory_space<vmem>>, %arg4: memref<1x64xf32, #tpu.memory_space<vmem>>, %arg5: memref<16x64xbf16, #tpu.memory_space<vmem>>) attributes {dimension_semantics = [#tpu.dimension_semantics<parallel>, #tpu.dimension_semantics<parallel>], iteration_bounds = array<i64: 1, 1>, scalar_prefetch = 0 : i64, scratch_operands = 0 : i64, tpu.core_type = #tpu.core_type<tc>, window_params = [{transform_indices = @transform_0, window_bounds = array<i64: 16, 32>}, {transform_indices = @transform_1, window_bounds = array<i64: 32, 64>}, {transform_indices = @transform_2, window_bounds = array<i64: 1, 64>}, {transform_indices = @transform_3, window_bounds = array<i64: 16, 64>}]} {
    %c0 = arith.constant 0 : index
    %c0_0 = arith.constant 0 : index
    %0 = vector.load %arg2[%c0, %c0_0] : memref<16x32xbf16, #tpu.memory_space<vmem>>, vector<16x32xbf16>
    %c0_1 = arith.constant 0 : index
    %c0_2 = arith.constant 0 : index
    %1 = vector.load %arg3[%c0_1, %c0_2] : memref<32x64xbf16, #tpu.memory_space<vmem>>, vector<32x64xbf16>
    %cst = arith.constant dense<0.000000e+00> : vector<16x64xf32>
    %2 = tpu.matmul %0, %1, %cst {dimension_numbers = #tpu.dot_dimension_numbers<[1], [0], [0], [1], [0, 0, 1, 1], [], []>} : vector<16x32xbf16>, vector<32x64xbf16>, vector<16x64xf32> -> vector<16x64xf32>
    %c0_3 = arith.constant 0 : index
    %c0_4 = arith.constant 0 : index
    %3 = vector.load %arg4[%c0_3, %c0_4] : memref<1x64xf32, #tpu.memory_space<vmem>>, vector<1x64xf32>
    %4 = vector.broadcast %3 : vector<1x64xf32> to vector<16x64xf32>
    %5 = arith.addf %2, %4 : vector<16x64xf32>
    %cst_5 = arith.constant 5.000000e-01 : f32
    %6 = vector.broadcast %cst_5 : f32 to vector<16x64xf32>
    %7 = arith.mulf %6, %5 : vector<16x64xf32>
    %cst_6 = arith.constant 4.471500e-02 : f32
    %8 = vector.broadcast %cst_6 : f32 to vector<16x64xf32>
    %9 = arith.mulf %8, %5 : vector<16x64xf32>
    %10 = arith.mulf %9, %5 : vector<16x64xf32>
    %11 = arith.mulf %10, %5 : vector<16x64xf32>
    %12 = arith.addf %5, %11 : vector<16x64xf32>
    %cst_7 = arith.constant 0.797884583 : f32
    %13 = vector.broadcast %cst_7 : f32 to vector<16x64xf32>
    %14 = arith.mulf %13, %12 : vector<16x64xf32>
    %15 = math.tanh %14 : vector<16x64xf32>
    %cst_8 = arith.constant 1.000000e+00 : f32
    %16 = vector.broadcast %cst_8 : f32 to vector<16x64xf32>
    %17 = arith.addf %16, %15 : vector<16x64xf32>
    %18 = arith.mulf %7, %17 : vector<16x64xf32>
    %19 = arith.truncf %18 : vector<16x64xf32> to vector<16x64xbf16>
    %c0_9 = arith.constant 0 : index
    %c0_10 = arith.constant 0 : index
    %20 = vector.load %arg5[%c0_9, %c0_10] : memref<16x64xbf16, #tpu.memory_space<vmem>>, vector<16x64xbf16>
    tpu.vector_store %arg5[%c0_9, %c0_10], %19 {strides = array<i32>} : memref<16x64xbf16, #tpu.memory_space<vmem>>, vector<16x64xbf16>,
    return
  }
  func.func @transform_0(%arg0: i32, %arg1: i32) -> (i32, i32) {
    %c0_i32 = arith.constant 0 : i32
    %c0_i32_0 = arith.constant 0 : i32
    return %arg0, %c0_i32 : i32, i32
  }
  func.func @transform_1(%arg0: i32, %arg1: i32) -> (i32, i32) {
    %c0_i32 = arith.constant 0 : i32
    %c0_i32_0 = arith.constant 0 : i32
    return %c0_i32, %arg1 : i32, i32
  }
  func.func @transform_2(%arg0: i32, %arg1: i32) -> (i32, i32) {
    %c0_i32 = arith.constant 0 : i32
    %c0_i32_0 = arith.constant 0 : i32
    return %c0_i32, %arg1 : i32, i32
  }
  func.func @transform_3(%arg0: i32, %arg1: i32) -> (i32, i32) {
    %c0_i32 = arith.constant 0 : i32
    return %arg0, %arg1 : i32, i32
  }
}

module attributes {stable_mosaic.version = 11 : i64} {
  func.func @_cls_head_kernel(%arg0: memref<2x32xf32, #tpu.memory_space<vmem>>, %arg1: memref<32x32xf32, #tpu.memory_space<vmem>>, %arg2: memref<1x32xf32, #tpu.memory_space<vmem>>, %arg3: memref<32x2xf32, #tpu.memory_space<vmem>>, %arg4: memref<1x2xf32, #tpu.memory_space<vmem>>, %arg5: memref<2x2xf32, #tpu.memory_space<vmem>>, %arg6: memref<2x2xf32, #tpu.memory_space<vmem>>, %arg7: memref<2x2xf32, #tpu.memory_space<vmem>>, %arg8: memref<1x1xf32, #tpu.memory_space<vmem>>) attributes {dimension_semantics = [], scalar_prefetch = 0 : i64, scratch_operands = 0 : i64, tpu.core_type = #tpu.core_type<tc>} {
    %c0 = arith.constant 0 : index
    %c0_0 = arith.constant 0 : index
    %0 = vector.load %arg0[%c0, %c0_0] : memref<2x32xf32, #tpu.memory_space<vmem>>, vector<2x32xf32>
    %c0_1 = arith.constant 0 : index
    %c0_2 = arith.constant 0 : index
    %1 = vector.load %arg1[%c0_1, %c0_2] : memref<32x32xf32, #tpu.memory_space<vmem>>, vector<32x32xf32>
    %cst = arith.constant dense<0.000000e+00> : vector<2x32xf32>
    %2 = tpu.matmul %0, %1, %cst {dimension_numbers = #tpu.dot_dimension_numbers<[1], [0], [0], [1], [0, 0, 1, 1], [], []>} : vector<2x32xf32>, vector<32x32xf32>, vector<2x32xf32> -> vector<2x32xf32>
    %c0_3 = arith.constant 0 : index
    %c0_4 = arith.constant 0 : index
    %3 = vector.load %arg2[%c0_3, %c0_4] : memref<1x32xf32, #tpu.memory_space<vmem>>, vector<1x32xf32>
    %4 = vector.broadcast %3 : vector<1x32xf32> to vector<2x32xf32>
    %5 = arith.addf %2, %4 : vector<2x32xf32>
    %cst_5 = arith.constant 0.000000e+00 : f32
    %6 = vector.broadcast %cst_5 : f32 to vector<2x32xf32>
    %7 = arith.maximumf %5, %6 : vector<2x32xf32>
    %c0_6 = arith.constant 0 : index
    %c0_7 = arith.constant 0 : index
    %8 = vector.load %arg3[%c0_6, %c0_7] : memref<32x2xf32, #tpu.memory_space<vmem>>, vector<32x2xf32>
    %cst_8 = arith.constant dense<0.000000e+00> : vector<2x2xf32>
    %9 = tpu.matmul %7, %8, %cst_8 {dimension_numbers = #tpu.dot_dimension_numbers<[1], [0], [0], [1], [0, 0, 1, 1], [], []>} : vector<2x32xf32>, vector<32x2xf32>, vector<2x2xf32> -> vector<2x2xf32>
    %c0_9 = arith.constant 0 : index
    %c0_10 = arith.constant 0 : index
    %10 = vector.load %arg4[%c0_9, %c0_10] : memref<1x2xf32, #tpu.memory_space<vmem>>, vector<1x2xf32>
    %11 = vector.broadcast %10 : vector<1x2xf32> to vector<2x2xf32>
    %12 = arith.addf %9, %11 : vector<2x2xf32>
    %c0_11 = arith.constant 0 : index
    %c0_12 = arith.constant 0 : index
    %13 = vector.load %arg6[%c0_11, %c0_12] : memref<2x2xf32, #tpu.memory_space<vmem>>, vector<2x2xf32>
    tpu.vector_store %arg6[%c0_11, %c0_12], %12 {strides = array<i32>} : memref<2x2xf32, #tpu.memory_space<vmem>>, vector<2x2xf32>,
    %cst_13 = arith.constant dense<0xFF800000> : vector<2xf32>
    %14 = vector.multi_reduction <maximumf>, %12, %cst_13 [1] : vector<2x2xf32> to vector<2xf32>
    %15 = vector.shape_cast %14 : vector<2xf32> to vector<2x1xf32>
    %16 = vector.broadcast %15 : vector<2x1xf32> to vector<2x2xf32>
    %17 = arith.subf %12, %16 : vector<2x2xf32>
    %18 = math.exp %17 : vector<2x2xf32>
    %cst_14 = arith.constant dense<0.000000e+00> : vector<2xf32>
    %19 = vector.multi_reduction <add>, %18, %cst_14 [1] : vector<2x2xf32> to vector<2xf32>
    %20 = vector.shape_cast %19 : vector<2xf32> to vector<2x1xf32>
    %21 = vector.broadcast %20 : vector<2x1xf32> to vector<2x2xf32>
    %22 = arith.divf %18, %21 : vector<2x2xf32>
    %c0_15 = arith.constant 0 : index
    %c0_16 = arith.constant 0 : index
    %23 = vector.load %arg7[%c0_15, %c0_16] : memref<2x2xf32, #tpu.memory_space<vmem>>, vector<2x2xf32>
    tpu.vector_store %arg7[%c0_15, %c0_16], %22 {strides = array<i32>} : memref<2x2xf32, #tpu.memory_space<vmem>>, vector<2x2xf32>,
    %24 = vector.broadcast %15 : vector<2x1xf32> to vector<2x2xf32>
    %25 = arith.subf %12, %24 : vector<2x2xf32>
    %26 = math.log %20 : vector<2x1xf32>
    %27 = vector.broadcast %26 : vector<2x1xf32> to vector<2x2xf32>
    %28 = arith.subf %25, %27 : vector<2x2xf32>
    %c0_17 = arith.constant 0 : index
    %c0_18 = arith.constant 0 : index
    %29 = vector.load %arg5[%c0_17, %c0_18] : memref<2x2xf32, #tpu.memory_space<vmem>>, vector<2x2xf32>
    %30 = arith.mulf %29, %28 : vector<2x2xf32>
    %31 = vector.shape_cast %30 : vector<2x2xf32> to vector<1x2x2xf32>
    %cst_19 = arith.constant dense<0.000000e+00> : vector<1xf32>
    %32 = vector.multi_reduction <add>, %31, %cst_19 [1, 2] : vector<1x2x2xf32> to vector<1xf32>
    %33 = vector.shape_cast %32 : vector<1xf32> to vector<1x1x1xf32>
    %34 = vector.extract %33[0, 0, 0] : f32 from vector<1x1x1xf32>
    %35 = vector.broadcast %34 : f32 to vector<1x1xf32>
    %cst_20 = arith.constant 0.000000e+00 : f32
    %36 = vector.broadcast %cst_20 : f32 to vector<1x1xf32>
    %37 = arith.subf %36, %35 : vector<1x1xf32>
    %cst_21 = arith.constant 2.000000e+00 : f32
    %38 = vector.broadcast %cst_21 : f32 to vector<1x1xf32>
    %39 = arith.divf %37, %38 : vector<1x1xf32>
    %c0_22 = arith.constant 0 : index
    %c0_23 = arith.constant 0 : index
    %40 = vector.load %arg8[%c0_22, %c0_23] : memref<1x1xf32, #tpu.memory_space<vmem>>, vector<1x1xf32>
    tpu.vector_store %arg8[%c0_22, %c0_23], %39 {strides = array<i32>} : memref<1x1xf32, #tpu.memory_space<vmem>>, vector<1x1xf32>,
    return
  }
}

module attributes {stable_mosaic.version = 11 : i64} {
  func.func @_matmul_add_ln_kernel(%arg0: i32, %arg1: memref<16x64xbf16, #tpu.memory_space<vmem>>, %arg2: memref<64x32xbf16, #tpu.memory_space<vmem>>, %arg3: memref<1x32xf32, #tpu.memory_space<vmem>>, %arg4: memref<16x32xbf16, #tpu.memory_space<vmem>>, %arg5: memref<1x32xf32, #tpu.memory_space<vmem>>, %arg6: memref<1x32xf32, #tpu.memory_space<vmem>>, %arg7: memref<16x32xbf16, #tpu.memory_space<vmem>>) attributes {dimension_semantics = [#tpu.dimension_semantics<parallel>], iteration_bounds = array<i64: 1>, scalar_prefetch = 0 : i64, scratch_operands = 0 : i64, tpu.core_type = #tpu.core_type<tc>, window_params = [{transform_indices = @transform_0, window_bounds = array<i64: 16, 64>}, {pipeline_mode = #tpu.pipeline_mode<synchronous>, transform_indices = @transform_1, window_bounds = array<i64: 64, 32>}, {pipeline_mode = #tpu.pipeline_mode<synchronous>, transform_indices = @transform_2, window_bounds = array<i64: 1, 32>}, {transform_indices = @transform_3, window_bounds = array<i64: 16, 32>}, {pipeline_mode = #tpu.pipeline_mode<synchronous>, transform_indices = @transform_4, window_bounds = array<i64: 1, 32>}, {pipeline_mode = #tpu.pipeline_mode<synchronous>, transform_indices = @transform_5, window_bounds = array<i64: 1, 32>}, {transform_indices = @transform_6, window_bounds = array<i64: 16, 32>}]} {
    %c0 = arith.constant 0 : index
    %c0_0 = arith.constant 0 : index
    %0 = vector.load %arg1[%c0, %c0_0] : memref<16x64xbf16, #tpu.memory_space<vmem>>, vector<16x64xbf16>
    %c0_1 = arith.constant 0 : index
    %c0_2 = arith.constant 0 : index
    %1 = vector.load %arg2[%c0_1, %c0_2] : memref<64x32xbf16, #tpu.memory_space<vmem>>, vector<64x32xbf16>
    %cst = arith.constant dense<0.000000e+00> : vector<16x32xf32>
    %2 = tpu.matmul %0, %1, %cst {dimension_numbers = #tpu.dot_dimension_numbers<[1], [0], [0], [1], [0, 0, 1, 1], [], []>} : vector<16x64xbf16>, vector<64x32xbf16>, vector<16x32xf32> -> vector<16x32xf32>
    %c0_3 = arith.constant 0 : index
    %c0_4 = arith.constant 0 : index
    %3 = vector.load %arg3[%c0_3, %c0_4] : memref<1x32xf32, #tpu.memory_space<vmem>>, vector<1x32xf32>
    %4 = vector.broadcast %3 : vector<1x32xf32> to vector<16x32xf32>
    %5 = arith.addf %2, %4 : vector<16x32xf32>
    %c0_5 = arith.constant 0 : index
    %c0_6 = arith.constant 0 : index
    %6 = vector.load %arg4[%c0_5, %c0_6] : memref<16x32xbf16, #tpu.memory_space<vmem>>, vector<16x32xbf16>
    %7 = arith.extf %6 : vector<16x32xbf16> to vector<16x32xf32>
    %8 = arith.addf %5, %7 : vector<16x32xf32>
    %cst_7 = arith.constant dense<0.000000e+00> : vector<16xf32>
    %9 = vector.multi_reduction <add>, %8, %cst_7 [1] : vector<16x32xf32> to vector<16xf32>
    %10 = vector.shape_cast %9 : vector<16xf32> to vector<16x1xf32>
    %cst_8 = arith.constant 3.200000e+01 : f32
    %11 = vector.broadcast %cst_8 : f32 to vector<16x1xf32>
    %12 = arith.divf %10, %11 : vector<16x1xf32>
    %13 = vector.broadcast %12 : vector<16x1xf32> to vector<16x32xf32>
    %14 = arith.subf %8, %13 : vector<16x32xf32>
    %15 = arith.mulf %14, %14 : vector<16x32xf32>
    %cst_9 = arith.constant dense<0.000000e+00> : vector<16xf32>
    %16 = vector.multi_reduction <add>, %15, %cst_9 [1] : vector<16x32xf32> to vector<16xf32>
    %17 = vector.shape_cast %16 : vector<16xf32> to vector<16x1xf32>
    %cst_10 = arith.constant 3.200000e+01 : f32
    %18 = vector.broadcast %cst_10 : f32 to vector<16x1xf32>
    %19 = arith.divf %17, %18 : vector<16x1xf32>
    %20 = vector.broadcast %12 : vector<16x1xf32> to vector<16x32xf32>
    %21 = arith.subf %8, %20 : vector<16x32xf32>
    %cst_11 = arith.constant 9.99999996E-13 : f32
    %22 = vector.broadcast %cst_11 : f32 to vector<16x1xf32>
    %23 = arith.addf %19, %22 : vector<16x1xf32>
    %24 = math.rsqrt %23 : vector<16x1xf32>
    %25 = vector.broadcast %24 : vector<16x1xf32> to vector<16x32xf32>
    %26 = arith.mulf %21, %25 : vector<16x32xf32>
    %c0_12 = arith.constant 0 : index
    %c0_13 = arith.constant 0 : index
    %27 = vector.load %arg5[%c0_12, %c0_13] : memref<1x32xf32, #tpu.memory_space<vmem>>, vector<1x32xf32>
    %28 = vector.broadcast %27 : vector<1x32xf32> to vector<16x32xf32>
    %29 = arith.mulf %26, %28 : vector<16x32xf32>
    %c0_14 = arith.constant 0 : index
    %c0_15 = arith.constant 0 : index
    %30 = vector.load %arg6[%c0_14, %c0_15] : memref<1x32xf32, #tpu.memory_space<vmem>>, vector<1x32xf32>
    %31 = vector.broadcast %30 : vector<1x32xf32> to vector<16x32xf32>
    %32 = arith.addf %29, %31 : vector<16x32xf32>
    %33 = arith.truncf %32 : vector<16x32xf32> to vector<16x32xbf16>
    %c0_16 = arith.constant 0 : index
    %c0_17 = arith.constant 0 : index
    %34 = vector.load %arg7[%c0_16, %c0_17] : memref<16x32xbf16, #tpu.memory_space<vmem>>, vector<16x32xbf16>
    tpu.vector_store %arg7[%c0_16, %c0_17], %33 {strides = array<i32>} : memref<16x32xbf16, #tpu.memory_space<vmem>>, vector<16x32xbf16>,
    return
  }
  func.func @transform_0(%arg0: i32) -> (i32, i32) {
    %c0_i32 = arith.constant 0 : i32
    %c0_i32_0 = arith.constant 0 : i32
    return %arg0, %c0_i32 : i32, i32
  }
  func.func @transform_1(%arg0: i32) -> (i32, i32) {
    %c0_i32 = arith.constant 0 : i32
    %c0_i32_0 = arith.constant 0 : i32
    %c0_i32_1 = arith.constant 0 : i32
    return %c0_i32, %c0_i32_0 : i32, i32
  }
  func.func @transform_2(%arg0: i32) -> (i32, i32) {
    %c0_i32 = arith.constant 0 : i32
    %c0_i32_0 = arith.constant 0 : i32
    %c0_i32_1 = arith.constant 0 : i32
    return %c0_i32, %c0_i32_0 : i32, i32
  }
  func.func @transform_3(%arg0: i32) -> (i32, i32) {
    %c0_i32 = arith.constant 0 : i32
    %c0_i32_0 = arith.constant 0 : i32
    return %arg0, %c0_i32 : i32, i32
  }
  func.func @transform_4(%arg0: i32) -> (i32, i32) {
    %c0_i32 = arith.constant 0 : i32
    %c0_i32_0 = arith.constant 0 : i32
    %c0_i32_1 = arith.constant 0 : i32
    return %c0_i32, %c0_i32_0 : i32, i32
  }
  func.func @transform_5(%arg0: i32) -> (i32, i32) {
    %c0_i32 = arith.constant 0 : i32
    %c0_i32_0 = arith.constant 0 : i32
    %c0_i32_1 = arith.constant 0 : i32
    return %c0_i32, %c0_i32_0 : i32, i32
  }
  func.func @transform_6(%arg0: i32) -> (i32, i32) {
    %c0_i32 = arith.constant 0 : i32
    %c0_i32_0 = arith.constant 0 : i32
    return %arg0, %c0_i32 : i32, i32
  }
}

</mosaic_0001>

<llo_original>
// kernel: distilbert_forward.13
$region0: #{distilbert_forward.13}
  #allocation0 [shape = 'u32[]', space=smem, size = 0x4, offset = 0x4, fixed_abs, tag = 'smem constant byte address 0x4 - core index']
  #allocation1 [shape = 'u32[144,128]{1,0:T(1,128)}', space=vmem, size = 0x12000, scoped, tag = 'internal scratch']
  %s0 = inlined_call_operand.vmem [shape: bf16[16,32], index: 0, kind: input, shape index: {}]
  %s1 = inlined_call_operand.vmem [shape: bf16[32,96], index: 1, kind: input, shape index: {}]
  %s2 = inlined_call_operand.vmem [shape: f32[1,96], index: 2, kind: input, shape index: {}]
  %s3 = inlined_call_operand.vmem [shape: bf16[16,96], index: 3, kind: output, shape index: {}]
  %s4 = sld [smem:[#allocation0]]
  $region22: #{distilbert_forward.13} parent=0
    _
  %s6 = ssub.s32 1, %s4
  %s7 = scalar_select 0, %s6, %s4
  // Predicated region
  $region2: #{distilbert_forward.13} parent=0 // pred_check
    _
  $region3: #{distilbert_forward.13} parent=0 // pred_check_branch
    %9 = sbr.rel (0) target = $region5
  $region4: #{distilbert_forward.13} parent=0 // pred_region
    _
  $region5: #{distilbert_forward.13} parent=0 // pred_fallthru
    _
  // Predicated region
  $region6: #{distilbert_forward.13} parent=0 // pred_check
    _
  $region7: #{distilbert_forward.13} parent=0 // pred_check_branch
    %11 = sbr.rel (0) target = $region9
  $region8: #{distilbert_forward.13} parent=0 // pred_region
    _
  $region9: #{distilbert_forward.13} parent=0 // pred_fallthru
    _
  // Predicated region
  $region10: #{distilbert_forward.13} parent=0 // pred_check
    _
  $region11: #{distilbert_forward.13} parent=0 // pred_check_branch
    %13 = sbr.rel (0) target = $region13
  $region12: #{distilbert_forward.13} parent=0 // pred_region
    _
  $region13: #{distilbert_forward.13} parent=0 // pred_fallthru
    _
  %v15 = vld [vmem:[%s0] sm:$0xf]
  %v16 = vld [vmem:[%s0 + $0x4] sm:$0xf]
  %v17 = vld [vmem:[%s1] sm:$0xf]
  %v18 = vld [vmem:[%s1 + $0x4] sm:$0xf]
  %v19 = vld [vmem:[%s1 + $0x8] sm:$0xf]
  %v20 = vld [vmem:[%s1 + $0xc] sm:$0xf]
  %v21 = vld [vmem:[%s2] sm:$0x1]
  %v23 = vlaneseq
  %v24 = vshrl.u32 %v23, 7
  %v25 = vsub.s32 0, %v24
  %v26 = vrot.slane %v21, %v25
  %v30 = vunpack.c.l.b16 %v15
  %v31 = vunpack.c.l.b16 %v16
  %v32 = vpack.c.b16 %v31, %v30
  %v37 = vunpack.c.l.b16 %v17
  %v38 = vunpack.c.l.b16 %v18
  %v39 = vunpack.c.l.b16 %v19
  %v40 = vunpack.c.l.b16 %v20
  %v41 = vpack.c.b16 %v38, %v37
  %v42 = vpack.c.b16 %v40, %v39
  %vm45 = vcmask 261120
  %v47 = vsel %vm45, %v32, 0
  %49 = vmatprep.subr.bf16.mxu0 0
  %50 = vmatpush1.bf16.msra.mxu0 %v41
  %51 = vmatprep.subr.bf16.mxu0 0
  %52 = vmatpush1.bf16.msra.mxu0 %v42
  %53 = vmatprep.subr.bf16.mxu0 0
  %54 = vmatpush1.bf16.msra.mxu0 0
  %55 = vmatprep.subr.bf16.mxu0 0
  %56 = vmatpush1.bf16.msra.mxu0 0
  %57 = vmatprep.subr.bf16.mxu0 0
  %58 = vmatpush1.bf16.msra.mxu0 0
  %59 = vmatprep.subr.bf16.mxu0 0
  %60 = vmatpush1.bf16.msra.mxu0 0
  %61 = vmatprep.subr.bf16.mxu0 0
  %62 = vmatpush1.bf16.msra.mxu0 0
  %63 = vmatprep.subr.bf16.mxu0 0
  %64 = vmatpush1.bf16.msra.mxu0 0
  %65 = vmatprep.subr.bf16.mxu0 0
  %66 = vmatpush1.bf16.msra.mxu0 0
  %67 = vmatprep.subr.bf16.mxu0 0
  %68 = vmatpush1.bf16.msra.mxu0 0
  %69 = vmatprep.subr.bf16.mxu0 0
  %70 = vmatpush1.bf16.msra.mxu0 0
  %71 = vmatprep.subr.bf16.mxu0 0
  %72 = vmatpush1.bf16.msra.mxu0 0
  %73 = vmatprep.subr.bf16.mxu0 0
  %74 = vmatpush1.bf16.msra.mxu0 0
  %75 = vmatprep.subr.bf16.mxu0 0
  %76 = vmatpush1.bf16.msra.mxu0 0
  %77 = vmatprep.subr.bf16.mxu0 0
  %78 = vmatpush1.bf16.msra.mxu0 0
  %79 = vmatprep.subr.bf16.mxu0 0
  %80 = vmatpush1.bf16.msra.mxu0 0
  %81 = vmatprep.mubr.bf16.mxu0 0
  %82 = vmatmul.mubr.bf16.gmra.mrb[0].mxu0 %v47
  %v83 = vpop.f32.mrb[0].mxu0
  %v84 = vadd.f32 %v26, %v83
  %v85 = vpop.f32.mrb[0].mxu0
  %v86 = vpop.f32.mrb[0].mxu0
  %v87 = vadd.f32 %v26, %v86
  %v88 = vpop.f32.mrb[0].mxu0
  %89 = vdwg.mxu0
  %v90 = vpack.c.bf16 %v87, %v84
  %v92 = vunpack.c.l.b16 %v90
  %v93 = vunpack.c.h.b16 %v90
  %v94 = vpack.c.b16 %v92, %v92
  %v95 = vpack.c.b16 %v93, %v93
  %vm98 = vcmask 781312
  %99 = vst.msk [vmem:[%s3] sm:$0xf] %vm98, %v94
  %100 = vst.msk [vmem:[%s3 + $0x4] sm:$0xf] %vm98, %v95
  // Predicated region
  $region14: #{distilbert_forward.13} parent=0 // pred_check
    _
  $region15: #{distilbert_forward.13} parent=0 // pred_check_branch
    %102 = sbr.rel (0) target = $region17
  $region16: #{distilbert_forward.13} parent=0 // pred_region
    _
  $region17: #{distilbert_forward.13} parent=0 // pred_fallthru
    _
  // Predicated region
  $region18: #{distilbert_forward.13} parent=0 // pred_check
    _
  $region19: #{distilbert_forward.13} parent=0 // pred_check_branch
    %104 = sbr.rel (0) target = $region21
  $region20: #{distilbert_forward.13} parent=0 // pred_region
    _
  $region21: #{distilbert_forward.13} parent=0 // pred_fallthru
    _

// kernel: distilbert_forward.12
$region0: #{distilbert_forward.12}
  #allocation0 [shape = 'u32[]', space=smem, size = 0x4, offset = 0x4, fixed_abs, tag = 'smem constant byte address 0x4 - core index']
  #allocation1 [shape = 'u32[144,128]{1,0:T(1,128)}', space=vmem, size = 0x12000, scoped, tag = 'internal scratch']
  %s0 = inlined_call_operand.vmem [shape: bf16[16,32], index: 0, kind: input, shape index: {}]
  %s1 = inlined_call_operand.vmem [shape: f32[1,32], index: 1, kind: input, shape index: {}]
  %s2 = inlined_call_operand.vmem [shape: f32[1,32], index: 2, kind: input, shape index: {}]
  %s3 = inlined_call_operand.vmem [shape: bf16[16,32], index: 3, kind: output, shape index: {}]
  %s4 = sld [smem:[#allocation0]]
  $region22: #{distilbert_forward.12} parent=0
    _
  %s6 = ssub.s32 1, %s4
  %s7 = scalar_select 0, %s6, %s4
  // Predicated region
  $region2: #{distilbert_forward.12} parent=0 // pred_check
    _
  $region3: #{distilbert_forward.12} parent=0 // pred_check_branch
    %9 = sbr.rel (0) target = $region5
  $region4: #{distilbert_forward.12} parent=0 // pred_region
    _
  $region5: #{distilbert_forward.12} parent=0 // pred_fallthru
    _
  // Predicated region
  $region6: #{distilbert_forward.12} parent=0 // pred_check
    _
  $region7: #{distilbert_forward.12} parent=0 // pred_check_branch
    %11 = sbr.rel (0) target = $region9
  $region8: #{distilbert_forward.12} parent=0 // pred_region
    _
  $region9: #{distilbert_forward.12} parent=0 // pred_fallthru
    _
  // Predicated region
  $region10: #{distilbert_forward.12} parent=0 // pred_check
    _
  $region11: #{distilbert_forward.12} parent=0 // pred_check_branch
    %13 = sbr.rel (0) target = $region13
  $region12: #{distilbert_forward.12} parent=0 // pred_region
    _
  $region13: #{distilbert_forward.12} parent=0 // pred_fallthru
    _
  %v14 = vld [vmem:[%s0] sm:$0xf]
  %v15 = vld [vmem:[%s0 + $0x4] sm:$0xf]
  %v16 = vunpack.c.l.bf16 %v14
  %v17 = vunpack.c.l.bf16 %v15
  %vm18 = vcmask 261120
  %v19 = vsel %vm18, %v16, 0.0
  %20 = vadd.xlane.f32.xlu0 %v19
  %v21 = vpop.xlane.xlu0 %20
  %v22 = vsel %vm18, %v17, 0.0
  %23 = vadd.xlane.f32.xlu0 %v22
  %v24 = vpop.xlane.xlu0 %23
  %v25 = vrcp.pop 32.0
  %v26 = vmul.f32 %v21, %v25
  %v27 = vmul.f32 %v24, %v25
  %v28 = vsub.f32 %v16, %v26
  %v29 = vsub.f32 %v17, %v27
  %v30 = vmul.f32 %v28, %v28
  %v31 = vmul.f32 %v29, %v29
  %v32 = vsel %vm18, %v30, 0.0
  %33 = vadd.xlane.f32.xlu0 %v32
  %v34 = vpop.xlane.xlu0 %33
  %v35 = vsel %vm18, %v31, 0.0
  %36 = vadd.xlane.f32.xlu0 %v35
  %v37 = vpop.xlane.xlu0 %36
  %v38 = vmul.f32 %v34, %v25
  %v39 = vmul.f32 %v37, %v25
  %v40 = vadd.f32 %v38, 1e-12
  %v41 = vadd.f32 %v39, 1e-12
  %v42 = vrsqrt.pop %v40
  %v43 = vrsqrt.pop %v41
  %v44 = vmul.f32 %v28, %v42
  %v45 = vmul.f32 %v29, %v43
  %v46 = vld [vmem:[%s1] sm:$0x1]
  %v48 = vlaneseq
  %v49 = vshrl.u32 %v48, 7
  %v50 = vsub.s32 0, %v49
  %v51 = vrot.slane %v46, %v50
  %v53 = vmul.f32 %v44, %v51
  %v54 = vmul.f32 %v45, %v51
  %v55 = vld [vmem:[%s2] sm:$0x1]
  %v57 = vlaneseq
  %v58 = vshrl.u32 %v57, 7
  %v59 = vsub.s32 0, %v58
  %v60 = vrot.slane %v55, %v59
  %v62 = vadd.f32 %v53, %v60
  %v63 = vadd.f32 %v54, %v60
  %v64 = vpack.c.bf16 %v63, %v62
  %v66 = vunpack.c.l.b16 %v64
  %v67 = vunpack.c.h.b16 %v64
  %v68 = vpack.c.b16 %v66, %v66
  %v69 = vpack.c.b16 %v67, %v67
  %vm72 = vcmask 257024
  %73 = vst.msk [vmem:[%s3] sm:$0xf] %vm72, %v68
  %74 = vst.msk [vmem:[%s3 + $0x4] sm:$0xf] %vm72, %v69
  // Predicated region
  $region14: #{distilbert_forward.12} parent=0 // pred_check
    _
  $region15: #{distilbert_forward.12} parent=0 // pred_check_branch
    %76 = sbr.rel (0) target = $region17
  $region16: #{distilbert_forward.12} parent=0 // pred_region
    _
  $region17: #{distilbert_forward.12} parent=0 // pred_fallthru
    _
  // Predicated region
  $region18: #{distilbert_forward.12} parent=0 // pred_check
    _
  $region19: #{distilbert_forward.12} parent=0 // pred_check_branch
    %78 = sbr.rel (0) target = $region21
  $region20: #{distilbert_forward.12} parent=0 // pred_region
    _
  $region21: #{distilbert_forward.12} parent=0 // pred_fallthru
    _

// kernel: distilbert_forward.14
$region0: #{distilbert_forward.14}
  #allocation0 [shape = 'u32[]', space=smem, size = 0x4, offset = 0x4, fixed_abs, tag = 'smem constant byte address 0x4 - core index']
  #allocation1 [shape = 'u32[144,128]{1,0:T(1,128)}', space=vmem, size = 0x12000, scoped, tag = 'internal scratch']
  %s0 = inlined_call_operand.vmem [shape: bf16[3,2,4,8,8], index: 0, kind: input, shape index: {}]
  %s1 = inlined_call_operand.vmem [shape: f32[2,1,8], index: 1, kind: input, shape index: {}]
  %s2 = inlined_call_operand.vmem [shape: bf16[2,4,8,8], index: 2, kind: output, shape index: {}]
  %s3 = sld [smem:[#allocation0]]
  $region82: #{distilbert_forward.14} parent=0
    _
  %s5 = ssub.s32 1, %s3
  %s6 = scalar_select 0, %s5, %s3
  $region1: #{distilbert_forward.14} parent=0
    #allocation2 [shape = 'u8[12288]{0}', space=vmem, size = 0x3000, scoped, tag = 'input window, operand 0']
    loop: start=0, step=1, limit=10
    $region2: #{distilbert_forward.14} parent=1 // loop_pre_header
      _
    $region3: #{distilbert_forward.14} parent=1 // loop_header
      %s8 = sphi 0, %s12
      %p9 = scmp.ge.s32.totalorder %s8, 10
      %s15 = sphi 0, %s27
      %s16 = sphi 0, %s23
      %s17 = sphi 0, %s15
      %s18 = sphi 0, %s16
      %s19 = sphi 0, %s17
      %s20 = sphi 0, %s18
      %s32 = sphi 0, %s34
      %s35 = sphi 0, %s32
      %s36 = sphi 0, %s35
      %s52 = sphi 0, %s36
      %s58 = sphi 0, %s60
      %s61 = sphi 0, %s58
      %s62 = sphi 0, %s61
      %s78 = sphi 0, %s62
      %s86 = sphi 0, %s88
      %s89 = sphi 0, %s86
      %s90 = sphi 0, %s89
      %s106 = sphi 0, %s90
    $region4: #{distilbert_forward.14} parent=1 // loop_header_branch
      %11 = sbr.rel (%p9) target = $region8
    $region5: #{distilbert_forward.14} parent=1 // loop_body
      %s13 = ssub.s32 %s8, 1
      %s14 = ssub.s32 %s8, 2
      %s21 = sadd.s32 1, %s16
      %p22 = scmp.ge.s32.totalorder %s21, 4
      %s23 = scalar_select %p22, 0, %s21
      %s24 = sadd.s32 1, %s15
      %s25 = scalar_select %p22, %s24, %s15
      %p26 = scmp.ge.s32.totalorder %s25, 2
      %s27 = scalar_select %p26, 0, %s25
      %s28 = ssub.s32 %s15, %s27
      %s29 = ssub.s32 %s16, %s23
      %s30 = sor.u32 %s28, %s29
      %p31 = scmp.eq.s32.totalorder %s30, 0
      %s33 = sadd.s32 %s32, 1
      %s34 = scalar_select %p31, %s32, %s33
      %p37 = pneg %p31
      %p38 = scmp.eq.s32.totalorder %s8, 7
      %p39 = por %p37, %p38
      %p40 = scmp.ne.s32.totalorder %s32, %s35
      %p41 = scmp.eq.s32.totalorder %s8, 0
      %p42 = por %p40, %p41
      %p43 = scmp.ne.s32.totalorder %s32, %s35
      %p44 = scmp.eq.s32.totalorder %s13, 7
      %p45 = por %p43, %p44
      %p46 = scmp.ne.s32.totalorder %s35, %s36
      %p47 = scmp.eq.s32.totalorder %s13, 0
      %p48 = por %p46, %p47
      %p49 = scmp.ne.s32.totalorder %s35, %s36
      %p50 = scmp.eq.s32.totalorder %s14, 7
      %p51 = por %p49, %p50
      %p53 = scmp.ne.s32.totalorder %s36, %s52
      %p54 = scmp.eq.s32.totalorder %s14, 0
      %p55 = por %p53, %p54
      %s56 = ssub.s32 %s15, %s27
      %p57 = scmp.eq.s32.totalorder %s56, 0
      %s59 = sadd.s32 %s58, 1
      %s60 = scalar_select %p57, %s58, %s59
      %p63 = pneg %p57
      %p64 = scmp.eq.s32.totalorder %s8, 7
      %p65 = por %p63, %p64
      %p66 = scmp.ne.s32.totalorder %s58, %s61
      %p67 = scmp.eq.s32.totalorder %s8, 0
      %p68 = por %p66, %p67
      %p69 = scmp.ne.s32.totalorder %s58, %s61
      %p70 = scmp.eq.s32.totalorder %s13, 7
      %p71 = por %p69, %p70
      %p72 = scmp.ne.s32.totalorder %s61, %s62
      %p73 = scmp.eq.s32.totalorder %s13, 0
      %p74 = por %p72, %p73
      %p75 = scmp.ne.s32.totalorder %s61, %s62
      %p76 = scmp.eq.s32.totalorder %s14, 7
      %p77 = por %p75, %p76
      %p79 = scmp.ne.s32.totalorder %s62, %s78
      %p80 = scmp.eq.s32.totalorder %s14, 0
      %p81 = por %p79, %p80
      %s82 = ssub.s32 %s15, %s27
      %s83 = ssub.s32 %s16, %s23
      %s84 = sor.u32 %s82, %s83
      %p85 = scmp.eq.s32.totalorder %s84, 0
      %s87 = sadd.s32 %s86, 1
      %s88 = scalar_select %p85, %s86, %s87
      %p91 = pneg %p85
      %p92 = scmp.eq.s32.totalorder %s8, 7
      %p93 = por %p91, %p92
      %p94 = scmp.ne.s32.totalorder %s86, %s89
      %p95 = scmp.eq.s32.totalorder %s8, 0
      %p96 = por %p94, %p95
      %p97 = scmp.ne.s32.totalorder %s86, %s89
      %p98 = scmp.eq.s32.totalorder %s13, 7
      %p99 = por %p97, %p98
      %p100 = scmp.ne.s32.totalorder %s89, %s90
      %p101 = scmp.eq.s32.totalorder %s13, 0
      %p102 = por %p100, %p101
      %p103 = scmp.ne.s32.totalorder %s89, %s90
      %p104 = scmp.eq.s32.totalorder %s14, 7
      %p105 = por %p103, %p104
      %p107 = scmp.ne.s32.totalorder %s90, %s106
      %p108 = scmp.eq.s32.totalorder %s14, 0
      %p109 = por %p107, %p108
      %p110 = scmp.le.s32.totalorder 1, %s8
      %p111 = scmp.lt.s32.totalorder %s8, 9
      %p112 = pnand %p110, %p111
      %p113 = pneg %p112
      // Predicated region
      $region9: #{distilbert_forward.14} parent=5 // pred_check
        _
      $region10: #{distilbert_forward.14} parent=5 // pred_check_branch
        %115 = sbr.rel (%p112) target = $region12
      $region11: #{distilbert_forward.14} parent=5 // pred_region
        %s116 = ssub.s32 %s8, 1
      $region12: #{distilbert_forward.14} parent=5 // pred_fallthru
        _
      %p117 = scmp.lt.s32.totalorder %s8, 8
      // Predicated region
      $region13: #{distilbert_forward.14} parent=5 // pred_check
        %p118 = pneg %p117
      $region14: #{distilbert_forward.14} parent=5 // pred_check_branch
        %120 = sbr.rel (%p118) target = $region16
      $region15: #{distilbert_forward.14} parent=5 // pred_region
        // Predicated region
        $region17: #{distilbert_forward.14} parent=15 // pred_check
          %p121 = pneg %p42
        $region18: #{distilbert_forward.14} parent=15 // pred_check_branch
          %123 = sbr.rel (%p121) target = $region20
        $region19: #{distilbert_forward.14} parent=15 // pred_region
          %s124 = sand.u32 %s32, 1
          %s125 = sand.u32 %s32, 1
          %s126 = smul.addr %s125, 12
          %s127 = scalar_lea.vmem [#allocation2], %s126
          %s128 = smul.addr %s15, 4
          %s129 = sadd.s32 %s16, %s128
          %s130 = smul.addr %s129, 4
          %s131 = scalar_lea.vmem %s0, %s130
          // Predicated region
          $region21: #{distilbert_forward.14} parent=19 // pred_check
            _
          $region22: #{distilbert_forward.14} parent=19 // pred_check_branch
            %133 = sbr.rel (0) target = $region24
          $region23: #{distilbert_forward.14} parent=19 // pred_region
            // Predicated region
            $region25: #{distilbert_forward.14} parent=23 // pred_check
              _
            $region26: #{distilbert_forward.14} parent=23 // pred_check_branch
              %135 = sbr.rel target = $region28
            $region27: #{distilbert_forward.14} parent=23 // pred_region
              // Predicated region
              $region40: #{distilbert_forward.14} parent=27 // pred_check
                _
              $region41: #{distilbert_forward.14} parent=27 // pred_check_branch
                %154 = sbr.rel (0) target = $region43
              $region42: #{distilbert_forward.14} parent=27 // pred_region
                loop: start=0, step=1, limit=1
                $region44: #{distilbert_forward.14} parent=42 // loop_pre_header
                  _
                $region45: #{distilbert_forward.14} parent=42 // loop_header
                  %s156 = sphi 0, %s160
                  %p157 = scmp.ge.s32.totalorder %s156, 1
                  %s161 = sphi %s131, %s131
                  %s162 = sphi %s127, %s127
                $region46: #{distilbert_forward.14} parent=42 // loop_header_branch
                  %159 = sbr.rel (%p157) target = $region50
                $region47: #{distilbert_forward.14} parent=42 // loop_body
                  _
                $region48: #{distilbert_forward.14} parent=42 // loop_footer
                  %s160 = sadd.s32 1, %s156
                $region49: #{distilbert_forward.14} parent=42 // loop_footer_branch
                  %155 = sbr.rel target = $region45
                $region50: #{distilbert_forward.14} parent=42 // loop_exit
                  _
                loop: start=0, step=1, limit=1
                $region51: #{distilbert_forward.14} parent=42 // loop_pre_header
                  _
                $region52: #{distilbert_forward.14} parent=42 // loop_header
                  %s165 = sphi 0, %s169
                  %p166 = scmp.ge.s32.totalorder %s165, 1
                  %s170 = sphi %s131, %s131
                  %s171 = sphi %s127, %s127
                $region53: #{distilbert_forward.14} parent=42 // loop_header_branch
                  %168 = sbr.rel (%p166) target = $region57
                $region54: #{distilbert_forward.14} parent=42 // loop_body
                  %v172 = vld [vmem:[%s170] sm:$0xf]
                  %173 = vst [vmem:[%s171] sm:$0xf] %v172
                  %v174 = vld [vmem:[%s170 + $0x20] sm:$0xf]
                  %175 = vst [vmem:[%s171 + $0x4] sm:$0xf] %v174
                  %v176 = vld [vmem:[%s170 + $0x40] sm:$0xf]
                  %177 = vst [vmem:[%s171 + $0x8] sm:$0xf] %v176
                $region55: #{distilbert_forward.14} parent=42 // loop_footer
                  %s169 = sadd.s32 1, %s165
                $region56: #{distilbert_forward.14} parent=42 // loop_footer_branch
                  %164 = sbr.rel target = $region52
                $region57: #{distilbert_forward.14} parent=42 // loop_exit
                  _
              $region43: #{distilbert_forward.14} parent=27 // pred_fallthru
                _
            $region28: #{distilbert_forward.14} parent=23 // pred_fallthru
              _
            // Predicated region
            $region29: #{distilbert_forward.14} parent=23 // pred_check
              _
            $region30: #{distilbert_forward.14} parent=23 // pred_check_branch
              %137 = sbr.rel (0) target = $region32
            $region31: #{distilbert_forward.14} parent=23 // pred_region
              loop: start=0, step=1, limit=1
              $region33: #{distilbert_forward.14} parent=31 // loop_pre_header
                _
              $region34: #{distilbert_forward.14} parent=31 // loop_header
                %s140 = sphi 0, %s144
                %p141 = scmp.ge.s32.totalorder %s140, 1
                %s145 = sphi %s131, %s131
                %s146 = sphi %s127, %s127
              $region35: #{distilbert_forward.14} parent=31 // loop_header_branch
                %143 = sbr.rel (%p141) target = $region39
              $region36: #{distilbert_forward.14} parent=31 // loop_body
                %v147 = vld [vmem:[%s145] sm:$0xf]
                %148 = vst [vmem:[%s146] sm:$0xf] %v147
                %v149 = vld [vmem:[%s145 + $0x20] sm:$0xf]
                %150 = vst [vmem:[%s146 + $0x4] sm:$0xf] %v149
                %v151 = vld [vmem:[%s145 + $0x40] sm:$0xf]
                %152 = vst [vmem:[%s146 + $0x8] sm:$0xf] %v151
              $region37: #{distilbert_forward.14} parent=31 // loop_footer
                %s144 = sadd.s32 1, %s140
              $region38: #{distilbert_forward.14} parent=31 // loop_footer_branch
                %139 = sbr.rel target = $region34
              $region39: #{distilbert_forward.14} parent=31 // loop_exit
                _
            $region32: #{distilbert_forward.14} parent=23 // pred_fallthru
              _
          $region24: #{distilbert_forward.14} parent=19 // pred_fallthru
            _
          %178 = vnop
        $region20: #{distilbert_forward.14} parent=15 // pred_fallthru
          _
        // Predicated region
        $region58: #{distilbert_forward.14} parent=15 // pred_check
          %p179 = pneg %p68
        $region59: #{distilbert_forward.14} parent=15 // pred_check_branch
          %181 = sbr.rel (%p179) target = $region61
        $region60: #{distilbert_forward.14} parent=15 // pred_region
          %p182 = scmp.lt.s32.totalorder %s15, 1
          %s183 = scalar_select %p182, %s15, 1
          %s184 = scalar_lea.vmem %s1, %s183
        $region61: #{distilbert_forward.14} parent=15 // pred_fallthru
          _
      $region16: #{distilbert_forward.14} parent=5 // pred_fallthru
        _
      %p185 = scmp.le.s32.totalorder 1, %s8
      %p186 = scmp.lt.s32.totalorder %s8, 9
      %p187 = pnand %p185, %p186
      %p188 = pneg %p187
      // Predicated region
      $region62: #{distilbert_forward.14} parent=5 // pred_check
        _
      $region63: #{distilbert_forward.14} parent=5 // pred_check_branch
        %190 = sbr.rel (%p187) target = $region65
      $region64: #{distilbert_forward.14} parent=5 // pred_region
        %s191 = ssub.s32 %s8, 1
        %s192 = sand.u32 %s35, 1
        %s193 = sand.u32 %s35, 1
        %s194 = smul.addr %s193, 12
        %s195 = scalar_lea.vmem [#allocation2], %s194
        // Predicated region
        $region66: #{distilbert_forward.14} parent=64 // pred_check
          %p196 = pneg %p48
        $region67: #{distilbert_forward.14} parent=64 // pred_check_branch
          %198 = sbr.rel (%p196) target = $region69
        $region68: #{distilbert_forward.14} parent=64 // pred_region
          _
        $region69: #{distilbert_forward.14} parent=64 // pred_fallthru
          _
        %s199 = sand.u32 %s35, 1
        %s200 = sand.u32 %s35, 1
        %s201 = smul.addr %s200, 12
        %s202 = scalar_lea.vmem [#allocation2], %s201
        %p203 = pneg %p48
        %p204 = pneg %p45
        %p205 = scmp.lt.s32.totalorder %s17, 1
        %s206 = scalar_select %p205, %s17, 1
        %s207 = scalar_lea.vmem %s1, %s206
        %p208 = pneg %p74
        %p209 = pneg %p71
        %p210 = pneg %p102
        %p211 = pneg %p99
        %p212 = scmp.lt.s32.totalorder %s17, 1
        %s213 = scalar_select %p212, %s17, 1
        %p214 = scmp.lt.s32.totalorder %s18, 3
        %s215 = scalar_select %p214, %s18, 3
        %s216 = smul.addr %s213, 4
        %s217 = sadd.s32 %s215, %s216
        %s218 = smul.addr %s217, 4
        %s219 = scalar_lea.vmem %s2, %s218
        %p220 = scmp.lt.s32.totalorder %s17, 1
        %s221 = scalar_select %p220, %s17, 1
        %s222 = scalar_lea.vmem %s1, %s221
        %p223 = scmp.lt.s32.totalorder %s17, 1
        %s224 = scalar_select %p223, %s17, 1
        %p225 = scmp.lt.s32.totalorder %s18, 3
        %s226 = scalar_select %p225, %s18, 3
        %s227 = smul.addr %s224, 4
        %s228 = sadd.s32 %s226, %s227
        %s229 = smul.addr %s228, 4
        %s230 = scalar_lea.vmem %s2, %s229
        %v233 = vld [vmem:[%s195] sm:$0xf]
        %v234 = vmul.bf16 %v233, 1052065461
        %s235 = scalar_lea.vmem %s195, 4 [#allocation2]
        %v236 = vld [vmem:[%s235] sm:$0xf]
        %s237 = scalar_lea.vmem %s195, 8 [#allocation2]
        %v238 = vld [vmem:[%s237] sm:$0xf]
        %v239 = vld [vmem:[%s222] sm:$0x1]
        %v241 = vlaneseq
        %v242 = vshrl.u32 %v241, 7
        %v243 = vsub.s32 0, %v242
        %v244 = vrot.slane %v239, %v243
        %vm246 = vcmask 64512
        %v248 = vsel %vm246, %v234, 0
        %v251 = vsel %vm246, %v236, 0
        %253 = vmatprep.subr.bf16.mxu0 0
        %254 = vmatpush1.bf16.xpose.msra.mxu0 %v251
        %255 = vmatprep.subr.bf16.mxu0 0
        %256 = vmatpush1.bf16.xpose.msra.mxu0 0
        %257 = vmatprep.subr.bf16.mxu0 0
        %258 = vmatpush1.bf16.xpose.msra.mxu0 0
        %259 = vmatprep.subr.bf16.mxu0 0
        %260 = vmatpush1.bf16.xpose.msra.mxu0 0
        %261 = vmatprep.subr.bf16.mxu0 0
        %262 = vmatpush1.bf16.xpose.msra.mxu0 0
        %263 = vmatprep.subr.bf16.mxu0 0
        %264 = vmatpush1.bf16.xpose.msra.mxu0 0
        %265 = vmatprep.subr.bf16.mxu0 0
        %266 = vmatpush1.bf16.xpose.msra.mxu0 0
        %267 = vmatprep.subr.bf16.mxu0 0
        %268 = vmatpush1.bf16.xpose.msra.mxu0 0
        %269 = vmatprep.subr.bf16.mxu0 0
        %270 = vmatpush1.bf16.xpose.msra.mxu0 0
        %271 = vmatprep.subr.bf16.mxu0 0
        %272 = vmatpush1.bf16.xpose.msra.mxu0 0
        %273 = vmatprep.subr.bf16.mxu0 0
        %274 = vmatpush1.bf16.xpose.msra.mxu0 0
        %275 = vmatprep.subr.bf16.mxu0 0
        %276 = vmatpush1.bf16.xpose.msra.mxu0 0
        %277 = vmatprep.subr.bf16.mxu0 0
        %278 = vmatpush1.bf16.xpose.msra.mxu0 0
        %279 = vmatprep.subr.bf16.mxu0 0
        %280 = vmatpush1.bf16.xpose.msra.mxu0 0
        %281 = vmatprep.subr.bf16.mxu0 0
        %282 = vmatpush1.bf16.xpose.msra.mxu0 0
        %283 = vmatprep.subr.bf16.mxu0 0
        %284 = vmatpush1.bf16.xpose.msra.mxu0 0
        %285 = vmatprep.mubr.bf16.mxu0 0
        %286 = vmatmul.mubr.bf16.gmra.mrb[0].mxu0 %v248
        %v287 = vpop.f32.mrb[0].mxu0
        %v288 = vadd.f32 %v244, %v287
        %v289 = vpop.f32.mrb[0].mxu0
        %v290 = vpop.f32.mrb[0].mxu0
        %v291 = vpop.f32.mrb[0].mxu0
        %292 = vdwg.mxu0
        %v293 = vsel %vm246, %v288, -inf
        %294 = vmax.xlane.f32.xlu0 %v293
        %v295 = vpop.xlane.xlu0 %294
        %v296 = vsub.f32 %v288, %v295
        %v297 = vmul.f32 %v296, 1.442695
        %v298 = vpow.pop %v297
        %v299 = vsel %vm246, %v298, 0.0
        %300 = vadd.xlane.f32.xlu0 %v299
        %v301 = vpop.xlane.xlu0 %300
        %v302 = vrcp.pop %v301
        %v303 = vmul.f32 %v298, %v302
        %v304 = vpack.c.bf16 %v303, %v303
        %v306 = vsel %vm246, %v304, 0
        %vm308 = vcmask 1043456
        %v310 = vsel %vm308, %v238, 0
        %312 = vmatprep.subr.bf16.mxu0 0
        %313 = vmatpush1.bf16.msra.mxu0 %v310
        %314 = vmatprep.subr.bf16.mxu0 0
        %315 = vmatpush1.bf16.msra.mxu0 0
        %316 = vmatprep.subr.bf16.mxu0 0
        %317 = vmatpush1.bf16.msra.mxu0 0
        %318 = vmatprep.subr.bf16.mxu0 0
        %319 = vmatpush1.bf16.msra.mxu0 0
        %320 = vmatprep.subr.bf16.mxu0 0
        %321 = vmatpush1.bf16.msra.mxu0 0
        %322 = vmatprep.subr.bf16.mxu0 0
        %323 = vmatpush1.bf16.msra.mxu0 0
        %324 = vmatprep.subr.bf16.mxu0 0
        %325 = vmatpush1.bf16.msra.mxu0 0
        %326 = vmatprep.subr.bf16.mxu0 0
        %327 = vmatpush1.bf16.msra.mxu0 0
        %328 = vmatprep.subr.bf16.mxu0 0
        %329 = vmatpush1.bf16.msra.mxu0 0
        %330 = vmatprep.subr.bf16.mxu0 0
        %331 = vmatpush1.bf16.msra.mxu0 0
        %332 = vmatprep.subr.bf16.mxu0 0
        %333 = vmatpush1.bf16.msra.mxu0 0
        %334 = vmatprep.subr.bf16.mxu0 0
        %335 = vmatpush1.bf16.msra.mxu0 0
        %336 = vmatprep.subr.bf16.mxu0 0
        %337 = vmatpush1.bf16.msra.mxu0 0
        %338 = vmatprep.subr.bf16.mxu0 0
        %339 = vmatpush1.bf16.msra.mxu0 0
        %340 = vmatprep.subr.bf16.mxu0 0
        %341 = vmatpush1.bf16.msra.mxu0 0
        %342 = vmatprep.subr.bf16.mxu0 0
        %343 = vmatpush1.bf16.msra.mxu0 0
        %344 = vmatprep.mubr.bf16.mxu0 0
        %345 = vmatmul.mubr.bf16.gmra.mrb[0].mxu0 %v306
        %v346 = vpop.f32.mrb[0].mxu0
        %v347 = vadd.f32 0.0, %v346
        %v348 = vpop.f32.mrb[0].mxu0
        %v349 = vpop.f32.mrb[0].mxu0
        %v350 = vpop.f32.mrb[0].mxu0
        %351 = vdwg.mxu0
        %v352 = vpack.c.bf16 %v347, %v347
        %vm353 = vcmask 60416
        %354 = vst.msk [vmem:[%s230] sm:$0xf] %vm353, %v352
        %p355 = scmp.lt.s32.totalorder %s17, 1
        %s356 = scalar_select %p355, %s17, 1
        %p357 = scmp.lt.s32.totalorder %s18, 3
        %s358 = scalar_select %p357, %s18, 3
        %s359 = smul.addr %s356, 4
        %s360 = sadd.s32 %s358, %s359
        %s361 = smul.addr %s360, 4
        %s362 = scalar_lea.vmem %s2, %s361
        // Predicated region
        $region70: #{distilbert_forward.14} parent=64 // pred_check
          %p363 = pneg %p99
        $region71: #{distilbert_forward.14} parent=64 // pred_check_branch
          %365 = sbr.rel (%p363) target = $region73
        $region72: #{distilbert_forward.14} parent=64 // pred_region
          _
        $region73: #{distilbert_forward.14} parent=64 // pred_fallthru
          _
      $region65: #{distilbert_forward.14} parent=5 // pred_fallthru
        _
      %p366 = scmp.le.s32.totalorder 2, %s8
      // Predicated region
      $region74: #{distilbert_forward.14} parent=5 // pred_check
        %p367 = pneg %p366
      $region75: #{distilbert_forward.14} parent=5 // pred_check_branch
        %369 = sbr.rel (%p367) target = $region77
      $region76: #{distilbert_forward.14} parent=5 // pred_region
        %s370 = ssub.s32 %s8, 2
        // Predicated region
        $region78: #{distilbert_forward.14} parent=76 // pred_check
          %p371 = pneg %p105
        $region79: #{distilbert_forward.14} parent=76 // pred_check_branch
          %373 = sbr.rel (%p371) target = $region81
        $region80: #{distilbert_forward.14} parent=76 // pred_region
          %p374 = scmp.lt.s32.totalorder %s19, 1
          %s375 = scalar_select %p374, %s19, 1
          %p376 = scmp.lt.s32.totalorder %s20, 3
          %s377 = scalar_select %p376, %s20, 3
          %s378 = smul.addr %s375, 4
          %s379 = sadd.s32 %s377, %s378
          %s380 = smul.addr %s379, 4
          %s381 = scalar_lea.vmem %s2, %s380
        $region81: #{distilbert_forward.14} parent=76 // pred_fallthru
          _
      $region77: #{distilbert_forward.14} parent=5 // pred_fallthru
        _
    $region6: #{distilbert_forward.14} parent=1 // loop_footer
      %s12 = sadd.s32 1, %s8
    $region7: #{distilbert_forward.14} parent=1 // loop_footer_branch
      %7 = sbr.rel target = $region3
    $region8: #{distilbert_forward.14} parent=1 // loop_exit
      _

// kernel: distilbert_forward.15
$region0: #{distilbert_forward.15}
  #allocation0 [shape = 'u32[]', space=smem, size = 0x4, offset = 0x4, fixed_abs, tag = 'smem constant byte address 0x4 - core index']
  #allocation1 [shape = 'u32[144,128]{1,0:T(1,128)}', space=vmem, size = 0x12000, scoped, tag = 'internal scratch']
  %s0 = inlined_call_operand.vmem [shape: bf16[16,32], index: 0, kind: input, shape index: {}]
  %s1 = inlined_call_operand.vmem [shape: bf16[32,32], index: 1, kind: input, shape index: {}]
  %s2 = inlined_call_operand.vmem [shape: f32[1,32], index: 2, kind: input, shape index: {}]
  %s3 = inlined_call_operand.vmem [shape: bf16[16,32], index: 3, kind: input, shape index: {}, may-alias: {3,6}]
  %s4 = inlined_call_operand.vmem [shape: f32[1,32], index: 4, kind: input, shape index: {}]
  %s5 = inlined_call_operand.vmem [shape: f32[1,32], index: 5, kind: input, shape index: {}]
  %s6 = inlined_call_operand.vmem [shape: bf16[16,32], index: 6, kind: output, shape index: {}, may-alias: {3,6}]
  %s7 = sld [smem:[#allocation0]]
  $region34: #{distilbert_forward.15} parent=0
    _
  %s9 = ssub.s32 1, %s7
  %s10 = scalar_select 0, %s9, %s7
  // Predicated region
  $region2: #{distilbert_forward.15} parent=0 // pred_check
    _
  $region3: #{distilbert_forward.15} parent=0 // pred_check_branch
    %12 = sbr.rel (0) target = $region5
  $region4: #{distilbert_forward.15} parent=0 // pred_region
    _
  $region5: #{distilbert_forward.15} parent=0 // pred_fallthru
    _
  // Predicated region
  $region6: #{distilbert_forward.15} parent=0 // pred_check
    _
  $region7: #{distilbert_forward.15} parent=0 // pred_check_branch
    %14 = sbr.rel (0) target = $region9
  $region8: #{distilbert_forward.15} parent=0 // pred_region
    _
  $region9: #{distilbert_forward.15} parent=0 // pred_fallthru
    _
  // Predicated region
  $region10: #{distilbert_forward.15} parent=0 // pred_check
    _
  $region11: #{distilbert_forward.15} parent=0 // pred_check_branch
    %16 = sbr.rel (0) target = $region13
  $region12: #{distilbert_forward.15} parent=0 // pred_region
    _
  $region13: #{distilbert_forward.15} parent=0 // pred_fallthru
    _
  // Predicated region
  $region14: #{distilbert_forward.15} parent=0 // pred_check
    _
  $region15: #{distilbert_forward.15} parent=0 // pred_check_branch
    %18 = sbr.rel (0) target = $region17
  $region16: #{distilbert_forward.15} parent=0 // pred_region
    _
  $region17: #{distilbert_forward.15} parent=0 // pred_fallthru
    _
  // Predicated region
  $region18: #{distilbert_forward.15} parent=0 // pred_check
    _
  $region19: #{distilbert_forward.15} parent=0 // pred_check_branch
    %20 = sbr.rel (0) target = $region21
  $region20: #{distilbert_forward.15} parent=0 // pred_region
    _
  $region21: #{distilbert_forward.15} parent=0 // pred_fallthru
    _
  // Predicated region
  $region22: #{distilbert_forward.15} parent=0 // pred_check
    _
  $region23: #{distilbert_forward.15} parent=0 // pred_check_branch
    %22 = sbr.rel (0) target = $region25
  $region24: #{distilbert_forward.15} parent=0 // pred_region
    _
  $region25: #{distilbert_forward.15} parent=0 // pred_fallthru
    _
  %v24 = vld [vmem:[%s0] sm:$0xf]
  %v25 = vld [vmem:[%s0 + $0x4] sm:$0xf]
  %v26 = vld [vmem:[%s1] sm:$0xf]
  %v27 = vld [vmem:[%s1 + $0x4] sm:$0xf]
  %v28 = vld [vmem:[%s1 + $0x8] sm:$0xf]
  %v29 = vld [vmem:[%s1 + $0xc] sm:$0xf]
  %v30 = vld [vmem:[%s2] sm:$0x1]
  %v32 = vlaneseq
  %v33 = vshrl.u32 %v32, 7
  %v34 = vsub.s32 0, %v33
  %v35 = vrot.slane %v30, %v34
  %v39 = vunpack.c.l.b16 %v24
  %v40 = vunpack.c.l.b16 %v25
  %v41 = vpack.c.b16 %v40, %v39
  %v46 = vunpack.c.l.b16 %v26
  %v47 = vunpack.c.l.b16 %v27
  %v48 = vunpack.c.l.b16 %v28
  %v49 = vunpack.c.l.b16 %v29
  %v50 = vpack.c.b16 %v47, %v46
  %v51 = vpack.c.b16 %v49, %v48
  %vm54 = vcmask 261120
  %v56 = vsel %vm54, %v41, 0
  %58 = vmatprep.subr.bf16.mxu0 0
  %59 = vmatpush1.bf16.msra.mxu0 %v50
  %60 = vmatprep.subr.bf16.mxu0 0
  %61 = vmatpush1.bf16.msra.mxu0 %v51
  %62 = vmatprep.subr.bf16.mxu0 0
  %63 = vmatpush1.bf16.msra.mxu0 0
  %64 = vmatprep.subr.bf16.mxu0 0
  %65 = vmatpush1.bf16.msra.mxu0 0
  %66 = vmatprep.subr.bf16.mxu0 0
  %67 = vmatpush1.bf16.msra.mxu0 0
  %68 = vmatprep.subr.bf16.mxu0 0
  %69 = vmatpush1.bf16.msra.mxu0 0
  %70 = vmatprep.subr.bf16.mxu0 0
  %71 = vmatpush1.bf16.msra.mxu0 0
  %72 = vmatprep.subr.bf16.mxu0 0
  %73 = vmatpush1.bf16.msra.mxu0 0
  %74 = vmatprep.subr.bf16.mxu0 0
  %75 = vmatpush1.bf16.msra.mxu0 0
  %76 = vmatprep.subr.bf16.mxu0 0
  %77 = vmatpush1.bf16.msra.mxu0 0
  %78 = vmatprep.subr.bf16.mxu0 0
  %79 = vmatpush1.bf16.msra.mxu0 0
  %80 = vmatprep.subr.bf16.mxu0 0
  %81 = vmatpush1.bf16.msra.mxu0 0
  %82 = vmatprep.subr.bf16.mxu0 0
  %83 = vmatpush1.bf16.msra.mxu0 0
  %84 = vmatprep.subr.bf16.mxu0 0
  %85 = vmatpush1.bf16.msra.mxu0 0
  %86 = vmatprep.subr.bf16.mxu0 0
  %87 = vmatpush1.bf16.msra.mxu0 0
  %88 = vmatprep.subr.bf16.mxu0 0
  %89 = vmatpush1.bf16.msra.mxu0 0
  %90 = vmatprep.mubr.bf16.mxu0 0
  %91 = vmatmul.mubr.bf16.gmra.mrb[0].mxu0 %v56
  %v92 = vpop.f32.mrb[0].mxu0
  %v93 = vadd.f32 %v35, %v92
  %v94 = vpop.f32.mrb[0].mxu0
  %v95 = vpop.f32.mrb[0].mxu0
  %v96 = vadd.f32 %v35, %v95
  %v97 = vpop.f32.mrb[0].mxu0
  %98 = vdwg.mxu0
  %v99 = vld [vmem:[%s3] sm:$0xf]
  %v100 = vld [vmem:[%s3 + $0x4] sm:$0xf]
  %v101 = vunpack.c.l.bf16 %v99
  %v102 = vunpack.c.l.bf16 %v100
  %v103 = vadd.f32 %v93, %v101
  %v104 = vadd.f32 %v96, %v102
  %v105 = vsel %vm54, %v103, 0.0
  %106 = vadd.xlane.f32.xlu0 %v105
  %v107 = vpop.xlane.xlu0 %106
  %v108 = vsel %vm54, %v104, 0.0
  %109 = vadd.xlane.f32.xlu0 %v108
  %v110 = vpop.xlane.xlu0 %109
  %v111 = vrcp.pop 32.0
  %v112 = vmul.f32 %v107, %v111
  %v113 = vmul.f32 %v110, %v111
  %v114 = vsub.f32 %v103, %v112
  %v115 = vsub.f32 %v104, %v113
  %v116 = vmul.f32 %v114, %v114
  %v117 = vmul.f32 %v115, %v115
  %v118 = vsel %vm54, %v116, 0.0
  %119 = vadd.xlane.f32.xlu0 %v118
  %v120 = vpop.xlane.xlu0 %119
  %v121 = vsel %vm54, %v117, 0.0
  %122 = vadd.xlane.f32.xlu0 %v121
  %v123 = vpop.xlane.xlu0 %122
  %v124 = vmul.f32 %v120, %v111
  %v125 = vmul.f32 %v123, %v111
  %v126 = vadd.f32 %v124, 1e-12
  %v127 = vadd.f32 %v125, 1e-12
  %v128 = vrsqrt.pop %v126
  %v129 = vrsqrt.pop %v127
  %v130 = vmul.f32 %v114, %v128
  %v131 = vmul.f32 %v115, %v129
  %v132 = vld [vmem:[%s4] sm:$0x1]
  %v134 = vlaneseq
  %v135 = vshrl.u32 %v134, 7
  %v136 = vsub.s32 0, %v135
  %v137 = vrot.slane %v132, %v136
  %v139 = vmul.f32 %v130, %v137
  %v140 = vmul.f32 %v131, %v137
  %v141 = vld [vmem:[%s5] sm:$0x1]
  %v143 = vlaneseq
  %v144 = vshrl.u32 %v143, 7
  %v145 = vsub.s32 0, %v144
  %v146 = vrot.slane %v141, %v145
  %v148 = vadd.f32 %v139, %v146
  %v149 = vadd.f32 %v140, %v146
  %v150 = vpack.c.bf16 %v149, %v148
  %v152 = vunpack.c.l.b16 %v150
  %v153 = vunpack.c.h.b16 %v150
  %v154 = vpack.c.b16 %v152, %v152
  %v155 = vpack.c.b16 %v153, %v153
  %vm158 = vcmask 257024
  %159 = vst.msk [vmem:[%s6] sm:$0xf] %vm158, %v154
  %160 = vst.msk [vmem:[%s6 + $0x4] sm:$0xf] %vm158, %v155
  // Predicated region
  $region26: #{distilbert_forward.15} parent=0 // pred_check
    _
  $region27: #{distilbert_forward.15} parent=0 // pred_check_branch
    %162 = sbr.rel (0) target = $region29
  $region28: #{distilbert_forward.15} parent=0 // pred_region
    _
  $region29: #{distilbert_forward.15} parent=0 // pred_fallthru
    _
  // Predicated region
  $region30: #{distilbert_forward.15} parent=0 // pred_check
    _
  $region31: #{distilbert_forward.15} parent=0 // pred_check_branch
    %164 = sbr.rel (0) target = $region33
  $region32: #{distilbert_forward.15} parent=0 // pred_region
    _
  $region33: #{distilbert_forward.15} parent=0 // pred_fallthru
    _

// kernel: distilbert_forward.16
$region0: #{distilbert_forward.16}
  #allocation0 [shape = 'u32[]', space=smem, size = 0x4, offset = 0x4, fixed_abs, tag = 'smem constant byte address 0x4 - core index']
  #allocation1 [shape = 'u32[144,128]{1,0:T(1,128)}', space=vmem, size = 0x12000, scoped, tag = 'internal scratch']
  %s0 = inlined_call_operand.vmem [shape: bf16[16,32], index: 0, kind: input, shape index: {}]
  %s1 = inlined_call_operand.vmem [shape: bf16[32,64], index: 1, kind: input, shape index: {}]
  %s2 = inlined_call_operand.vmem [shape: f32[1,64], index: 2, kind: input, shape index: {}]
  %s3 = inlined_call_operand.vmem [shape: bf16[16,64], index: 3, kind: output, shape index: {}]
  %s4 = sld [smem:[#allocation0]]
  $region22: #{distilbert_forward.16} parent=0
    _
  %s6 = ssub.s32 1, %s4
  %s7 = scalar_select 0, %s6, %s4
  // Predicated region
  $region2: #{distilbert_forward.16} parent=0 // pred_check
    _
  $region3: #{distilbert_forward.16} parent=0 // pred_check_branch
    %9 = sbr.rel (0) target = $region5
  $region4: #{distilbert_forward.16} parent=0 // pred_region
    _
  $region5: #{distilbert_forward.16} parent=0 // pred_fallthru
    _
  // Predicated region
  $region6: #{distilbert_forward.16} parent=0 // pred_check
    _
  $region7: #{distilbert_forward.16} parent=0 // pred_check_branch
    %11 = sbr.rel (0) target = $region9
  $region8: #{distilbert_forward.16} parent=0 // pred_region
    _
  $region9: #{distilbert_forward.16} parent=0 // pred_fallthru
    _
  // Predicated region
  $region10: #{distilbert_forward.16} parent=0 // pred_check
    _
  $region11: #{distilbert_forward.16} parent=0 // pred_check_branch
    %13 = sbr.rel (0) target = $region13
  $region12: #{distilbert_forward.16} parent=0 // pred_region
    _
  $region13: #{distilbert_forward.16} parent=0 // pred_fallthru
    _
  %v15 = vld [vmem:[%s0] sm:$0xf]
  %v16 = vld [vmem:[%s0 + $0x4] sm:$0xf]
  %v17 = vld [vmem:[%s1] sm:$0xf]
  %v18 = vld [vmem:[%s1 + $0x4] sm:$0xf]
  %v19 = vld [vmem:[%s1 + $0x8] sm:$0xf]
  %v20 = vld [vmem:[%s1 + $0xc] sm:$0xf]
  %v21 = vld [vmem:[%s2] sm:$0x1]
  %v23 = vlaneseq
  %v24 = vshrl.u32 %v23, 7
  %v25 = vsub.s32 0, %v24
  %v26 = vrot.slane %v21, %v25
  %v30 = vunpack.c.l.b16 %v15
  %v31 = vunpack.c.l.b16 %v16
  %v32 = vpack.c.b16 %v31, %v30
  %v37 = vunpack.c.l.b16 %v17
  %v38 = vunpack.c.l.b16 %v18
  %v39 = vunpack.c.l.b16 %v19
  %v40 = vunpack.c.l.b16 %v20
  %v41 = vpack.c.b16 %v38, %v37
  %v42 = vpack.c.b16 %v40, %v39
  %vm45 = vcmask 261120
  %v47 = vsel %vm45, %v32, 0
  %49 = vmatprep.subr.bf16.mxu0 0
  %50 = vmatpush1.bf16.msra.mxu0 %v41
  %51 = vmatprep.subr.bf16.mxu0 0
  %52 = vmatpush1.bf16.msra.mxu0 %v42
  %53 = vmatprep.subr.bf16.mxu0 0
  %54 = vmatpush1.bf16.msra.mxu0 0
  %55 = vmatprep.subr.bf16.mxu0 0
  %56 = vmatpush1.bf16.msra.mxu0 0
  %57 = vmatprep.subr.bf16.mxu0 0
  %58 = vmatpush1.bf16.msra.mxu0 0
  %59 = vmatprep.subr.bf16.mxu0 0
  %60 = vmatpush1.bf16.msra.mxu0 0
  %61 = vmatprep.subr.bf16.mxu0 0
  %62 = vmatpush1.bf16.msra.mxu0 0
  %63 = vmatprep.subr.bf16.mxu0 0
  %64 = vmatpush1.bf16.msra.mxu0 0
  %65 = vmatprep.subr.bf16.mxu0 0
  %66 = vmatpush1.bf16.msra.mxu0 0
  %67 = vmatprep.subr.bf16.mxu0 0
  %68 = vmatpush1.bf16.msra.mxu0 0
  %69 = vmatprep.subr.bf16.mxu0 0
  %70 = vmatpush1.bf16.msra.mxu0 0
  %71 = vmatprep.subr.bf16.mxu0 0
  %72 = vmatpush1.bf16.msra.mxu0 0
  %73 = vmatprep.subr.bf16.mxu0 0
  %74 = vmatpush1.bf16.msra.mxu0 0
  %75 = vmatprep.subr.bf16.mxu0 0
  %76 = vmatpush1.bf16.msra.mxu0 0
  %77 = vmatprep.subr.bf16.mxu0 0
  %78 = vmatpush1.bf16.msra.mxu0 0
  %79 = vmatprep.subr.bf16.mxu0 0
  %80 = vmatpush1.bf16.msra.mxu0 0
  %81 = vmatprep.mubr.bf16.mxu0 0
  %82 = vmatmul.mubr.bf16.gmra.mrb[0].mxu0 %v47
  %v83 = vpop.f32.mrb[0].mxu0
  %v84 = vadd.f32 %v26, %v83
  %v85 = vpop.f32.mrb[0].mxu0
  %v86 = vpop.f32.mrb[0].mxu0
  %v87 = vadd.f32 %v26, %v86
  %v88 = vpop.f32.mrb[0].mxu0
  %89 = vdwg.mxu0
  %v90 = vmul.f32 %v84, 0.5
  %v91 = vmul.f32 %v87, 0.5
  %v92 = vmul.f32 %v84, 0.044715
  %v93 = vmul.f32 %v87, 0.044715
  %v94 = vmul.f32 %v92, %v84
  %v95 = vmul.f32 %v93, %v87
  %v96 = vmul.f32 %v94, %v84
  %v97 = vmul.f32 %v95, %v87
  %v98 = vadd.f32 %v84, %v96
  %v99 = vadd.f32 %v87, %v97
  %v100 = vmul.f32 %v98, 0.7978846
  %v101 = vmul.f32 %v99, 0.7978846
  %v102 = vtanh.pop %v100
  %v103 = vtanh.pop %v101
  %v104 = vadd.f32 %v102, 1.0
  %v105 = vadd.f32 %v103, 1.0
  %v106 = vmul.f32 %v90, %v104
  %v107 = vmul.f32 %v91, %v105
  %v108 = vpack.c.bf16 %v107, %v106
  %v110 = vunpack.c.l.b16 %v108
  %v111 = vunpack.c.h.b16 %v108
  %v112 = vpack.c.b16 %v110, %v110
  %v113 = vpack.c.b16 %v111, %v111
  %vm116 = vcmask 519168
  %117 = vst.msk [vmem:[%s3] sm:$0xf] %vm116, %v112
  %118 = vst.msk [vmem:[%s3 + $0x4] sm:$0xf] %vm116, %v113
  // Predicated region
  $region14: #{distilbert_forward.16} parent=0 // pred_check
    _
  $region15: #{distilbert_forward.16} parent=0 // pred_check_branch
    %120 = sbr.rel (0) target = $region17
  $region16: #{distilbert_forward.16} parent=0 // pred_region
    _
  $region17: #{distilbert_forward.16} parent=0 // pred_fallthru
    _
  // Predicated region
  $region18: #{distilbert_forward.16} parent=0 // pred_check
    _
  $region19: #{distilbert_forward.16} parent=0 // pred_check_branch
    %122 = sbr.rel (0) target = $region21
  $region20: #{distilbert_forward.16} parent=0 // pred_region
    _
  $region21: #{distilbert_forward.16} parent=0 // pred_fallthru
    _

// kernel: distilbert_forward.23
$region0: #{distilbert_forward.23}
  #allocation0 [shape = 'u32[]', space=smem, size = 0x4, offset = 0x4, fixed_abs, tag = 'smem constant byte address 0x4 - core index']
  #allocation1 [shape = 'u32[144,128]{1,0:T(1,128)}', space=vmem, size = 0x12000, scoped, tag = 'internal scratch']
  %s0 = inlined_call_operand.vmem [shape: f32[2,32], index: 0, kind: input, shape index: {}]
  %s1 = inlined_call_operand.vmem [shape: f32[32,32], index: 1, kind: input, shape index: {}]
  %s2 = inlined_call_operand.vmem [shape: f32[1,32], index: 2, kind: input, shape index: {}]
  %s3 = inlined_call_operand.vmem [shape: f32[32,2], index: 3, kind: input, shape index: {}]
  %s4 = inlined_call_operand.vmem [shape: f32[1,2], index: 4, kind: input, shape index: {}]
  %s5 = inlined_call_operand.vmem [shape: f32[2,2], index: 5, kind: input, shape index: {}]
  %s6 = inlined_call_operand.hbm [shape: f32[2,2], index: 6, kind: output, shape index: {0}]
  %s7 = inlined_call_operand.hbm [shape: f32[2,2], index: 7, kind: output, shape index: {1}]
  %s8 = inlined_call_operand.hbm [shape: f32[1,1], index: 8, kind: output, shape index: {2}]
  %9 = xla_tuple %s6, %s7, %s8
  %s10 = sld [smem:[#allocation0]]
  $region50: #{distilbert_forward.23} parent=0
    _
  %s12 = ssub.s32 1, %s10
  %s13 = scalar_select 0, %s12, %s10
  $region1: #{distilbert_forward.23} parent=0
    #allocation2 [shape = 'u8[1024]{0}', space=vmem, size = 0x400, scoped, tag = 'output window, operand 0, single buffered']
    #allocation3 [shape = 's32[1]{0}', space=sflag, size = 0x4, scoped, tag = 'scoped memory for distilbert_forward.23']
    #allocation4 [shape = 'u8[1024]{0}', space=vmem, size = 0x400, scoped, tag = 'output window, operand 1, single buffered']
    #allocation5 [shape = 's32[1]{0}', space=sflag, size = 0x4, scoped, tag = 'scoped memory for distilbert_forward.23']
    #allocation6 [shape = 'u8[512]{0}', space=vmem, size = 0x400, scoped, tag = 'output window, operand 2, single buffered']
    %14 = vsyncpa [#allocation3], 0
    %15 = vsyncpa [#allocation5], 0
    // Predicated region
    $region2: #{distilbert_forward.23} parent=1 // pred_check
      _
    $region3: #{distilbert_forward.23} parent=1 // pred_check_branch
      %17 = sbr.rel (0) target = $region5
    $region4: #{distilbert_forward.23} parent=1 // pred_region
      _
    $region5: #{distilbert_forward.23} parent=1 // pred_fallthru
      _
    // Predicated region
    $region6: #{distilbert_forward.23} parent=1 // pred_check
      _
    $region7: #{distilbert_forward.23} parent=1 // pred_check_branch
      %19 = sbr.rel (0) target = $region9
    $region8: #{distilbert_forward.23} parent=1 // pred_region
      _
    $region9: #{distilbert_forward.23} parent=1 // pred_fallthru
      _
    // Predicated region
    $region10: #{distilbert_forward.23} parent=1 // pred_check
      _
    $region11: #{distilbert_forward.23} parent=1 // pred_check_branch
      %21 = sbr.rel (0) target = $region13
    $region12: #{distilbert_forward.23} parent=1 // pred_region
      _
    $region13: #{distilbert_forward.23} parent=1 // pred_fallthru
      _
    // Predicated region
    $region14: #{distilbert_forward.23} parent=1 // pred_check
      _
    $region15: #{distilbert_forward.23} parent=1 // pred_check_branch
      %23 = sbr.rel (0) target = $region17
    $region16: #{distilbert_forward.23} parent=1 // pred_region
      _
    $region17: #{distilbert_forward.23} parent=1 // pred_fallthru
      _
    // Predicated region
    $region18: #{distilbert_forward.23} parent=1 // pred_check
      _
    $region19: #{distilbert_forward.23} parent=1 // pred_check_branch
      %25 = sbr.rel (0) target = $region21
    $region20: #{distilbert_forward.23} parent=1 // pred_region
      _
    $region21: #{distilbert_forward.23} parent=1 // pred_fallthru
      _
    // Predicated region
    $region22: #{distilbert_forward.23} parent=1 // pred_check
      _
    $region23: #{distilbert_forward.23} parent=1 // pred_check_branch
      %27 = sbr.rel (0) target = $region25
    $region24: #{distilbert_forward.23} parent=1 // pred_region
      _
    $region25: #{distilbert_forward.23} parent=1 // pred_fallthru
      _
    %v28 = vld [vmem:[%s0] sm:$0x3]
    %v29 = vld [vmem:[%s1] sm:$0xff]
    %v30 = vld [vmem:[%s1 + $0x8] sm:$0xff]
    %v31 = vld [vmem:[%s1 + $0x10] sm:$0xff]
    %v32 = vld [vmem:[%s1 + $0x18] sm:$0xff]
    %v33 = vld [vmem:[%s2] sm:$0x1]
    %v35 = vlaneseq
    %v36 = vshrl.u32 %v35, 7
    %v37 = vsub.s32 0, %v36
    %v38 = vrot.slane %v33, %v37
    %vm40 = vcmask 261120
    %v42 = vsel %vm40, %v28, 0
    %44 = vmatprep.subr.mxu0 0.0
    %45 = vmatpush1.msra.mxu0 %v29
    %46 = vmatprep.subr.mxu0 0.0
    %47 = vmatpush1.msra.mxu0 %v30
    %48 = vmatprep.subr.mxu0 0.0
    %49 = vmatpush1.msra.mxu0 %v31
    %50 = vmatprep.subr.mxu0 0.0
    %51 = vmatpush1.msra.mxu0 %v32
    %52 = vmatprep.subr.mxu0 0.0
    %53 = vmatpush1.msra.mxu0 0.0
    %54 = vmatprep.subr.mxu0 0.0
    %55 = vmatpush1.msra.mxu0 0.0
    %56 = vmatprep.subr.mxu0 0.0
    %57 = vmatpush1.msra.mxu0 0.0
    %58 = vmatprep.subr.mxu0 0.0
    %59 = vmatpush1.msra.mxu0 0.0
    %60 = vmatprep.subr.mxu0 0.0
    %61 = vmatpush1.msra.mxu0 0.0
    %62 = vmatprep.subr.mxu0 0.0
    %63 = vmatpush1.msra.mxu0 0.0
    %64 = vmatprep.subr.mxu0 0.0
    %65 = vmatpush1.msra.mxu0 0.0
    %66 = vmatprep.subr.mxu0 0.0
    %67 = vmatpush1.msra.mxu0 0.0
    %68 = vmatprep.subr.mxu0 0.0
    %69 = vmatpush1.msra.mxu0 0.0
    %70 = vmatprep.subr.mxu0 0.0
    %71 = vmatpush1.msra.mxu0 0.0
    %72 = vmatprep.subr.mxu0 0.0
    %73 = vmatpush1.msra.mxu0 0.0
    %74 = vmatprep.subr.mxu0 0.0
    %75 = vmatpush1.msra.mxu0 0.0
    %76 = vmatprep.subr.mxu0 0.0
    %77 = vmatpush1.msra.mxu0 0.0
    %78 = vmatprep.subr.mxu0 0.0
    %79 = vmatpush1.msra.mxu0 0.0
    %80 = vmatprep.subr.mxu0 0.0
    %81 = vmatpush1.msra.mxu0 0.0
    %82 = vmatprep.subr.mxu0 0.0
    %83 = vmatpush1.msra.mxu0 0.0
    %84 = vmatprep.subr.mxu0 0.0
    %85 = vmatpush1.msra.mxu0 0.0
    %86 = vmatprep.subr.mxu0 0.0
    %87 = vmatpush1.msra.mxu0 0.0
    %88 = vmatprep.subr.mxu0 0.0
    %89 = vmatpush1.msra.mxu0 0.0
    %90 = vmatprep.subr.mxu0 0.0
    %91 = vmatpush1.msra.mxu0 0.0
    %92 = vmatprep.subr.mxu0 0.0
    %93 = vmatpush1.msra.mxu0 0.0
    %94 = vmatprep.subr.mxu0 0.0
    %95 = vmatpush1.msra.mxu0 0.0
    %96 = vmatprep.subr.mxu0 0.0
    %97 = vmatpush1.msra.mxu0 0.0
    %98 = vmatprep.subr.mxu0 0.0
    %99 = vmatpush1.msra.mxu0 0.0
    %100 = vmatprep.subr.mxu0 0.0
    %101 = vmatpush1.msra.mxu0 0.0
    %102 = vmatprep.subr.mxu0 0.0
    %103 = vmatpush1.msra.mxu0 0.0
    %104 = vmatprep.subr.mxu0 0.0
    %105 = vmatpush1.msra.mxu0 0.0
    %106 = vmatprep.subr.mxu0 0.0
    %107 = vmatpush1.msra.mxu0 0.0
    %108 = vmatprep.mubr.f32.mxu0 0.0
    %109 = vmatmul.mubr.f32.gmra.mrb[0].mxu0 %v42
    %v110 = vpop.f32.mrb[0].mxu0
    %v111 = vadd.f32 %v38, %v110
    %v112 = vpop.f32.mrb[0].mxu0
    %113 = vdwg.mxu0
    %v114 = vmax.f32 %v111, 0.0
    %v115 = vld [vmem:[%s3] sm:$0xff]
    %v116 = vld [vmem:[%s3 + $0x8] sm:$0xff]
    %v117 = vld [vmem:[%s3 + $0x10] sm:$0xff]
    %v118 = vld [vmem:[%s3 + $0x18] sm:$0xff]
    %v119 = vld [vmem:[%s4] sm:$0x1]
    %v121 = vlaneseq
    %v122 = vshrl.u32 %v121, 7
    %v123 = vsub.s32 0, %v122
    %v124 = vrot.slane %v119, %v123
    %v127 = vsel %vm40, %v114, 0
    %129 = vmatprep.subr.mxu0 0.0
    %130 = vmatpush1.msra.mxu0 %v115
    %131 = vmatprep.subr.mxu0 0.0
    %132 = vmatpush1.msra.mxu0 %v116
    %133 = vmatprep.subr.mxu0 0.0
    %134 = vmatpush1.msra.mxu0 %v117
    %135 = vmatprep.subr.mxu0 0.0
    %136 = vmatpush1.msra.mxu0 %v118
    %137 = vmatprep.subr.mxu0 0.0
    %138 = vmatpush1.msra.mxu0 0.0
    %139 = vmatprep.subr.mxu0 0.0
    %140 = vmatpush1.msra.mxu0 0.0
    %141 = vmatprep.subr.mxu0 0.0
    %142 = vmatpush1.msra.mxu0 0.0
    %143 = vmatprep.subr.mxu0 0.0
    %144 = vmatpush1.msra.mxu0 0.0
    %145 = vmatprep.subr.mxu0 0.0
    %146 = vmatpush1.msra.mxu0 0.0
    %147 = vmatprep.subr.mxu0 0.0
    %148 = vmatpush1.msra.mxu0 0.0
    %149 = vmatprep.subr.mxu0 0.0
    %150 = vmatpush1.msra.mxu0 0.0
    %151 = vmatprep.subr.mxu0 0.0
    %152 = vmatpush1.msra.mxu0 0.0
    %153 = vmatprep.subr.mxu0 0.0
    %154 = vmatpush1.msra.mxu0 0.0
    %155 = vmatprep.subr.mxu0 0.0
    %156 = vmatpush1.msra.mxu0 0.0
    %157 = vmatprep.subr.mxu0 0.0
    %158 = vmatpush1.msra.mxu0 0.0
    %159 = vmatprep.subr.mxu0 0.0
    %160 = vmatpush1.msra.mxu0 0.0
    %161 = vmatprep.subr.mxu0 0.0
    %162 = vmatpush1.msra.mxu0 0.0
    %163 = vmatprep.subr.mxu0 0.0
    %164 = vmatpush1.msra.mxu0 0.0
    %165 = vmatprep.subr.mxu0 0.0
    %166 = vmatpush1.msra.mxu0 0.0
    %167 = vmatprep.subr.mxu0 0.0
    %168 = vmatpush1.msra.mxu0 0.0
    %169 = vmatprep.subr.mxu0 0.0
    %170 = vmatpush1.msra.mxu0 0.0
    %171 = vmatprep.subr.mxu0 0.0
    %172 = vmatpush1.msra.mxu0 0.0
    %173 = vmatprep.subr.mxu0 0.0
    %174 = vmatpush1.msra.mxu0 0.0
    %175 = vmatprep.subr.mxu0 0.0
    %176 = vmatpush1.msra.mxu0 0.0
    %177 = vmatprep.subr.mxu0 0.0
    %178 = vmatpush1.msra.mxu0 0.0
    %179 = vmatprep.subr.mxu0 0.0
    %180 = vmatpush1.msra.mxu0 0.0
    %181 = vmatprep.subr.mxu0 0.0
    %182 = vmatpush1.msra.mxu0 0.0
    %183 = vmatprep.subr.mxu0 0.0
    %184 = vmatpush1.msra.mxu0 0.0
    %185 = vmatprep.subr.mxu0 0.0
    %186 = vmatpush1.msra.mxu0 0.0
    %187 = vmatprep.subr.mxu0 0.0
    %188 = vmatpush1.msra.mxu0 0.0
    %189 = vmatprep.subr.mxu0 0.0
    %190 = vmatpush1.msra.mxu0 0.0
    %191 = vmatprep.subr.mxu0 0.0
    %192 = vmatpush1.msra.mxu0 0.0
    %193 = vmatprep.mubr.f32.mxu0 0.0
    %194 = vmatmul.mubr.f32.gmra.mrb[0].mxu0 %v127
    %v195 = vpop.f32.mrb[0].mxu0
    %v196 = vadd.f32 %v124, %v195
    %v197 = vpop.f32.mrb[0].mxu0
    %198 = vdwg.mxu0
    %vm199 = vcmask 9216
    %200 = vst.msk [vmem:[#allocation2] sm:$0x3] %vm199, %v196
    %v201 = vsel %vm199, %v196, -inf
    %202 = vmax.xlane.f32.xlu0 %v201
    %v203 = vpop.xlane.xlu0 %202
    %v204 = vsub.f32 %v196, %v203
    %v205 = vmul.f32 %v204, 1.442695
    %v206 = vpow.pop %v205
    %v207 = vsel %vm199, %v206, 0.0
    %208 = vadd.xlane.f32.xlu0 %v207
    %v209 = vpop.xlane.xlu0 %208
    %v210 = vrcp.pop %v209
    %v211 = vmul.f32 %v206, %v210
    %212 = vst.msk [vmem:[#allocation4] sm:$0x3] %vm199, %v211
    %v213 = vlog2.pop %v209
    %v214 = vmul.f32 %v213, 0.6931472
    %v215 = vsub.f32 %v204, %v214
    %v216 = vld [vmem:[%s5] sm:$0x3]
    %v217 = vmul.f32 %v216, %v215
    %v218 = vsel %vm199, %v217, 0.0
    %219 = vadd.xlane.f32.xlu0 %v218
    %v220 = vpop.xlane.xlu0 %219
    %v221 = vrot.slane %v220, 4
    %v222 = vadd.f32 %v220, %v221
    %v223 = vrot.slane %v222, 2
    %v224 = vadd.f32 %v222, %v223
    %v225 = vrot.slane %v224, 1
    %v226 = vadd.f32 %v224, %v225
    %s227 = vtos %v226
    %v228 = vstv %s227
    %v229 = vsub.f32 0.0, %v228
    %v230 = vrcp.pop 2.0
    %v231 = vmul.f32 %v229, %v230
    %vm232 = vcmask 0
    %233 = vst.msk [vmem:[#allocation6] sm:$0x1] %vm232, %v231
    // Predicated region
    $region26: #{distilbert_forward.23} parent=1 // pred_check
      _
    $region27: #{distilbert_forward.23} parent=1 // pred_check_branch
      %235 = sbr.rel (0) target = $region29
    $region28: #{distilbert_forward.23} parent=1 // pred_region
      %s237 = ssub.s32 32, 32
      %238 = vsyncadd [#allocation3], %s237
      %s240 = sshll.u32 [#allocation2], 4
      %s241 = int_to_ptr.vmem [resolvable:$true] %s240
      %243 = dma.vmem_to_hbm [thread:$0]  %s241, 32, %s6, [#allocation3]
    $region29: #{distilbert_forward.23} parent=1 // pred_fallthru
      _
    // Predicated region
    $region30: #{distilbert_forward.23} parent=1 // pred_check
      _
    $region31: #{distilbert_forward.23} parent=1 // pred_check_branch
      %245 = sbr.rel (0) target = $region33
    $region32: #{distilbert_forward.23} parent=1 // pred_region
      %s247 = ssub.s32 32, 32
      %248 = vsyncadd [#allocation5], %s247
      %s250 = sshll.u32 [#allocation4], 4
      %s251 = int_to_ptr.vmem [resolvable:$true] %s250
      %253 = dma.vmem_to_hbm [thread:$0]  %s251, 32, %s7, [#allocation5]
    $region33: #{distilbert_forward.23} parent=1 // pred_fallthru
      _
    // Predicated region
    $region34: #{distilbert_forward.23} parent=1 // pred_check
      _
    $region35: #{distilbert_forward.23} parent=1 // pred_check_branch
      %255 = sbr.rel (0) target = $region37
    $region36: #{distilbert_forward.23} parent=1 // pred_region
      %s257 = ssub.s32 16, 16
      %258 = vsyncadd [#allocation5], %s257
      %s260 = sshll.u32 [#allocation6], 4
      %s261 = int_to_ptr.vmem [resolvable:$true] %s260
      %263 = dma.vmem_to_hbm [thread:$0]  %s261, 16, %s8, [#allocation5]
    $region37: #{distilbert_forward.23} parent=1 // pred_fallthru
      _
    // Predicated region
    $region38: #{distilbert_forward.23} parent=1 // pred_check
      _
    $region39: #{distilbert_forward.23} parent=1 // pred_check_branch
      %265 = sbr.rel (0) target = $region41
    $region40: #{distilbert_forward.23} parent=1 // pred_region
      %266 = dma.done [#allocation3], 32
    $region41: #{distilbert_forward.23} parent=1 // pred_fallthru
      _
    // Predicated region
    $region42: #{distilbert_forward.23} parent=1 // pred_check
      _
    $region43: #{distilbert_forward.23} parent=1 // pred_check_branch
      %268 = sbr.rel (0) target = $region45
    $region44: #{distilbert_forward.23} parent=1 // pred_region
      %269 = dma.done [#allocation5], 32
    $region45: #{distilbert_forward.23} parent=1 // pred_fallthru
      _
    // Predicated region
    $region46: #{distilbert_forward.23} parent=1 // pred_check
      _
    $region47: #{distilbert_forward.23} parent=1 // pred_check_branch
      %271 = sbr.rel (0) target = $region49
    $region48: #{distilbert_forward.23} parent=1 // pred_region
      %272 = dma.done [#allocation5], 16
    $region49: #{distilbert_forward.23} parent=1 // pred_fallthru
      _
    %273 = vsyncpa [#allocation3], 1
    %274 = vsyncpa [#allocation5], 1

// kernel: distilbert_forward.17
$region0: #{distilbert_forward.17}
  #allocation0 [shape = 'u32[]', space=smem, size = 0x4, offset = 0x4, fixed_abs, tag = 'smem constant byte address 0x4 - core index']
  #allocation1 [shape = 'u32[144,128]{1,0:T(1,128)}', space=vmem, size = 0x12000, scoped, tag = 'internal scratch']
  %s0 = inlined_call_operand.vmem [shape: bf16[16,64], index: 0, kind: input, shape index: {}]
  %s1 = inlined_call_operand.vmem [shape: bf16[64,32], index: 1, kind: input, shape index: {}]
  %s2 = inlined_call_operand.vmem [shape: f32[1,32], index: 2, kind: input, shape index: {}]
  %s3 = inlined_call_operand.vmem [shape: bf16[16,32], index: 3, kind: input, shape index: {}, may-alias: {3,6}]
  %s4 = inlined_call_operand.vmem [shape: f32[1,32], index: 4, kind: input, shape index: {}]
  %s5 = inlined_call_operand.vmem [shape: f32[1,32], index: 5, kind: input, shape index: {}]
  %s6 = inlined_call_operand.vmem [shape: bf16[16,32], index: 6, kind: output, shape index: {}, may-alias: {3,6}]
  %s7 = sld [smem:[#allocation0]]
  $region34: #{distilbert_forward.17} parent=0
    _
  %s9 = ssub.s32 1, %s7
  %s10 = scalar_select 0, %s9, %s7
  // Predicated region
  $region2: #{distilbert_forward.17} parent=0 // pred_check
    _
  $region3: #{distilbert_forward.17} parent=0 // pred_check_branch
    %12 = sbr.rel (0) target = $region5
  $region4: #{distilbert_forward.17} parent=0 // pred_region
    _
  $region5: #{distilbert_forward.17} parent=0 // pred_fallthru
    _
  // Predicated region
  $region6: #{distilbert_forward.17} parent=0 // pred_check
    _
  $region7: #{distilbert_forward.17} parent=0 // pred_check_branch
    %14 = sbr.rel (0) target = $region9
  $region8: #{distilbert_forward.17} parent=0 // pred_region
    _
  $region9: #{distilbert_forward.17} parent=0 // pred_fallthru
    _
  // Predicated region
  $region10: #{distilbert_forward.17} parent=0 // pred_check
    _
  $region11: #{distilbert_forward.17} parent=0 // pred_check_branch
    %16 = sbr.rel (0) target = $region13
  $region12: #{distilbert_forward.17} parent=0 // pred_region
    _
  $region13: #{distilbert_forward.17} parent=0 // pred_fallthru
    _
  // Predicated region
  $region14: #{distilbert_forward.17} parent=0 // pred_check
    _
  $region15: #{distilbert_forward.17} parent=0 // pred_check_branch
    %18 = sbr.rel (0) target = $region17
  $region16: #{distilbert_forward.17} parent=0 // pred_region
    _
  $region17: #{distilbert_forward.17} parent=0 // pred_fallthru
    _
  // Predicated region
  $region18: #{distilbert_forward.17} parent=0 // pred_check
    _
  $region19: #{distilbert_forward.17} parent=0 // pred_check_branch
    %20 = sbr.rel (0) target = $region21
  $region20: #{distilbert_forward.17} parent=0 // pred_region
    _
  $region21: #{distilbert_forward.17} parent=0 // pred_fallthru
    _
  // Predicated region
  $region22: #{distilbert_forward.17} parent=0 // pred_check
    _
  $region23: #{distilbert_forward.17} parent=0 // pred_check_branch
    %22 = sbr.rel (0) target = $region25
  $region24: #{distilbert_forward.17} parent=0 // pred_region
    _
  $region25: #{distilbert_forward.17} parent=0 // pred_fallthru
    _
  %v24 = vld [vmem:[%s0] sm:$0xf]
  %v25 = vld [vmem:[%s0 + $0x4] sm:$0xf]
  %v26 = vld [vmem:[%s1] sm:$0xf]
  %v27 = vld [vmem:[%s1 + $0x4] sm:$0xf]
  %v28 = vld [vmem:[%s1 + $0x8] sm:$0xf]
  %v29 = vld [vmem:[%s1 + $0xc] sm:$0xf]
  %v30 = vld [vmem:[%s1 + $0x10] sm:$0xf]
  %v31 = vld [vmem:[%s1 + $0x14] sm:$0xf]
  %v32 = vld [vmem:[%s1 + $0x18] sm:$0xf]
  %v33 = vld [vmem:[%s1 + $0x1c] sm:$0xf]
  %v34 = vld [vmem:[%s2] sm:$0x1]
  %v36 = vlaneseq
  %v37 = vshrl.u32 %v36, 7
  %v38 = vsub.s32 0, %v37
  %v39 = vrot.slane %v34, %v38
  %v43 = vunpack.c.l.b16 %v24
  %v44 = vunpack.c.l.b16 %v25
  %v45 = vpack.c.b16 %v44, %v43
  %v54 = vunpack.c.l.b16 %v26
  %v55 = vunpack.c.l.b16 %v27
  %v56 = vunpack.c.l.b16 %v28
  %v57 = vunpack.c.l.b16 %v29
  %v58 = vunpack.c.l.b16 %v30
  %v59 = vunpack.c.l.b16 %v31
  %v60 = vunpack.c.l.b16 %v32
  %v61 = vunpack.c.l.b16 %v33
  %v62 = vpack.c.b16 %v55, %v54
  %v63 = vpack.c.b16 %v57, %v56
  %v64 = vpack.c.b16 %v59, %v58
  %v65 = vpack.c.b16 %v61, %v60
  %vm70 = vcmask 523264
  %v72 = vsel %vm70, %v45, 0
  %74 = vmatprep.subr.bf16.mxu0 0
  %75 = vmatpush1.bf16.msra.mxu0 %v62
  %76 = vmatprep.subr.bf16.mxu0 0
  %77 = vmatpush1.bf16.msra.mxu0 %v63
  %78 = vmatprep.subr.bf16.mxu0 0
  %79 = vmatpush1.bf16.msra.mxu0 %v64
  %80 = vmatprep.subr.bf16.mxu0 0
  %81 = vmatpush1.bf16.msra.mxu0 %v65
  %82 = vmatprep.subr.bf16.mxu0 0
  %83 = vmatpush1.bf16.msra.mxu0 0
  %84 = vmatprep.subr.bf16.mxu0 0
  %85 = vmatpush1.bf16.msra.mxu0 0
  %86 = vmatprep.subr.bf16.mxu0 0
  %87 = vmatpush1.bf16.msra.mxu0 0
  %88 = vmatprep.subr.bf16.mxu0 0
  %89 = vmatpush1.bf16.msra.mxu0 0
  %90 = vmatprep.subr.bf16.mxu0 0
  %91 = vmatpush1.bf16.msra.mxu0 0
  %92 = vmatprep.subr.bf16.mxu0 0
  %93 = vmatpush1.bf16.msra.mxu0 0
  %94 = vmatprep.subr.bf16.mxu0 0
  %95 = vmatpush1.bf16.msra.mxu0 0
  %96 = vmatprep.subr.bf16.mxu0 0
  %97 = vmatpush1.bf16.msra.mxu0 0
  %98 = vmatprep.subr.bf16.mxu0 0
  %99 = vmatpush1.bf16.msra.mxu0 0
  %100 = vmatprep.subr.bf16.mxu0 0
  %101 = vmatpush1.bf16.msra.mxu0 0
  %102 = vmatprep.subr.bf16.mxu0 0
  %103 = vmatpush1.bf16.msra.mxu0 0
  %104 = vmatprep.subr.bf16.mxu0 0
  %105 = vmatpush1.bf16.msra.mxu0 0
  %106 = vmatprep.mubr.bf16.mxu0 0
  %107 = vmatmul.mubr.bf16.gmra.mrb[0].mxu0 %v72
  %v108 = vpop.f32.mrb[0].mxu0
  %v109 = vadd.f32 %v39, %v108
  %v110 = vpop.f32.mrb[0].mxu0
  %v111 = vpop.f32.mrb[0].mxu0
  %v112 = vadd.f32 %v39, %v111
  %v113 = vpop.f32.mrb[0].mxu0
  %114 = vdwg.mxu0
  %v115 = vld [vmem:[%s3] sm:$0xf]
  %v116 = vld [vmem:[%s3 + $0x4] sm:$0xf]
  %v117 = vunpack.c.l.bf16 %v115
  %v118 = vunpack.c.l.bf16 %v116
  %v119 = vadd.f32 %v109, %v117
  %v120 = vadd.f32 %v112, %v118
  %vm121 = vcmask 261120
  %v122 = vsel %vm121, %v119, 0.0
  %123 = vadd.xlane.f32.xlu0 %v122
  %v124 = vpop.xlane.xlu0 %123
  %v125 = vsel %vm121, %v120, 0.0
  %126 = vadd.xlane.f32.xlu0 %v125
  %v127 = vpop.xlane.xlu0 %126
  %v128 = vrcp.pop 32.0
  %v129 = vmul.f32 %v124, %v128
  %v130 = vmul.f32 %v127, %v128
  %v131 = vsub.f32 %v119, %v129
  %v132 = vsub.f32 %v120, %v130
  %v133 = vmul.f32 %v131, %v131
  %v134 = vmul.f32 %v132, %v132
  %v135 = vsel %vm121, %v133, 0.0
  %136 = vadd.xlane.f32.xlu0 %v135
  %v137 = vpop.xlane.xlu0 %136
  %v138 = vsel %vm121, %v134, 0.0
  %139 = vadd.xlane.f32.xlu0 %v138
  %v140 = vpop.xlane.xlu0 %139
  %v141 = vmul.f32 %v137, %v128
  %v142 = vmul.f32 %v140, %v128
  %v143 = vadd.f32 %v141, 1e-12
  %v144 = vadd.f32 %v142, 1e-12
  %v145 = vrsqrt.pop %v143
  %v146 = vrsqrt.pop %v144
  %v147 = vmul.f32 %v131, %v145
  %v148 = vmul.f32 %v132, %v146
  %v149 = vld [vmem:[%s4] sm:$0x1]
  %v151 = vlaneseq
  %v152 = vshrl.u32 %v151, 7
  %v153 = vsub.s32 0, %v152
  %v154 = vrot.slane %v149, %v153
  %v156 = vmul.f32 %v147, %v154
  %v157 = vmul.f32 %v148, %v154
  %v158 = vld [vmem:[%s5] sm:$0x1]
  %v160 = vlaneseq
  %v161 = vshrl.u32 %v160, 7
  %v162 = vsub.s32 0, %v161
  %v163 = vrot.slane %v158, %v162
  %v165 = vadd.f32 %v156, %v163
  %v166 = vadd.f32 %v157, %v163
  %v167 = vpack.c.bf16 %v166, %v165
  %v169 = vunpack.c.l.b16 %v167
  %v170 = vunpack.c.h.b16 %v167
  %v171 = vpack.c.b16 %v169, %v169
  %v172 = vpack.c.b16 %v170, %v170
  %vm175 = vcmask 257024
  %176 = vst.msk [vmem:[%s6] sm:$0xf] %vm175, %v171
  %177 = vst.msk [vmem:[%s6 + $0x4] sm:$0xf] %vm175, %v172
  // Predicated region
  $region26: #{distilbert_forward.17} parent=0 // pred_check
    _
  $region27: #{distilbert_forward.17} parent=0 // pred_check_branch
    %179 = sbr.rel (0) target = $region29
  $region28: #{distilbert_forward.17} parent=0 // pred_region
    _
  $region29: #{distilbert_forward.17} parent=0 // pred_fallthru
    _
  // Predicated region
  $region30: #{distilbert_forward.17} parent=0 // pred_check
    _
  $region31: #{distilbert_forward.17} parent=0 // pred_check_branch
    %181 = sbr.rel (0) target = $region33
  $region32: #{distilbert_forward.17} parent=0 // pred_region
    _
  $region33: #{distilbert_forward.17} parent=0 // pred_fallthru
    _

</llo_original>
